<compile_context>
chip_gen: v7x
topology: tpu7x:2x2x1
jax: 0.10.0
libtpu: 0.0.40
codegen_flags: <defaults>
</compile_context>

<pallas_src>
import functools

import jax
import jax.numpy as jnp
from jax import lax
from jax.experimental import pallas as pl
from jax.experimental.pallas import tpu as pltpu

EPS = 1e-5
LANE = 128                     # TPU lane width: channel dims padded to multiples of this
MATMUL_DTYPE = jnp.bfloat16    # MXU-native operand dtype; accumulation stays f32


# ----------------------------- chip-aware knobs ----------------------------- #

@functools.lru_cache(maxsize=None)
def _chip_kind():
    try:
        return jax.devices()[0].device_kind.lower()
    except Exception:           # conservative defaults if device query fails
        return ""


def _is_v5():
    return "v5" in _chip_kind()


def _is_v7():
    return "v7" in _chip_kind()


def _vmem_limit(need_bytes):
    """Scoped-VMEM limit derived from the actual per-step footprint, clamped per chip."""
    cap = (56 if _is_v7() else 96) << 20          # v7x: 64 MiB physical; v5e/v6e: 128 MiB
    return int(min(cap, max(32 << 20, int(need_bytes * 1.5) + (4 << 20))))


# ----------------------------- small helpers ------------------------------- #

def _ceil_to(v, m):
    return -(-v // m) * m


def _pad_last(a, n):
    pad = [(0, 0)] * (a.ndim - 1) + [(0, n - a.shape[-1])]
    return jnp.pad(a, pad)


def _pad2(w, r, c):
    return jnp.pad(w, ((0, r - w.shape[0]), (0, c - w.shape[1])))


def _fold_bn(p, cpad):
    # inference-mode BN folded to per-channel scale/shift, zero-padded to lane width
    scale = p["gamma"] / jnp.sqrt(p["var"] + EPS)
    shift = p["beta"] - p["mean"] * scale
    scale = jnp.pad(scale, (0, cpad - scale.shape[0]))
    shift = jnp.pad(shift, (0, cpad - shift.shape[0]))
    return scale[None, :].astype(jnp.float32), shift[None, :].astype(jnp.float32)


def _row_tiling(m, cin_p, cmid_p):
    """Stage-1 row tile: biggest tile inside a VMEM budget, >= 2 grid steps when possible."""
    target = 512 if _is_v7() else 1024            # v7x has half the VMEM of v5e/v6e
    per_row = 2 * 2 * (cin_p + cmid_p)            # double-buffered bf16 input + bf16 output
    tm = min(target, max(16, (24 << 20) // per_row))
    tm = min(tm, m)
    if tm >= m and m > 16:
        tm = -(-m // 2)                           # keep >= 2 steps (pipelining / megacore)
    tm = max(16, _ceil_to(tm, 16))
    return tm, _ceil_to(m, tm)


def _pick_rows(hout, wout):
    """Stage-2 output-row strip: ~512 output pixels per step, >= 2 strips, prefer a divisor
    of hout so no padded output rows are computed."""
    rows = max(1, min(hout, 512 // max(wout, 1)))
    if hout >= 2:
        rows = min(rows, -(-hout // 2))
    for d in range(rows, 0, -1):
        if hout % d == 0:
            return d if 2 * d >= rows else rows
    return rows


# ----------------------------- Pallas kernels ------------------------------ #

def _stage1_kernel(x_ref, s1_ref, b1_ref, w1_ref, s2_ref, b2_ref, a2_ref):
    # a2 = relu(bn2( relu(bn1(x)) @ W1 ))
    # BN1+ReLU in f32 on the VPU (input arrives bf16, upcast here), 1x1 conv on the MXU
    # with bf16 operands / f32 accumulation, BN2+ReLU epilogue fused.
    a1 = jnp.maximum(x_ref[...].astype(jnp.float32) * s1_ref[...] + b1_ref[...], 0.0)
    h1 = jnp.dot(a1.astype(w1_ref.dtype), w1_ref[...],
                 preferred_element_type=jnp.float32)
    a2_ref[...] = jnp.maximum(h1 * s2_ref[...] + b2_ref[...], 0.0).astype(a2_ref.dtype)


def _make_stage2_kernel(stride, rows, wout, cmid_p, has_down, pair_taps):
    s = stride
    mo = rows * wout
    # Static geometry of the 9 conv taps in phase (space-to-depth) layout:
    # tap t = dy*3+dx reads phase plane p = (dy%s)*s + dx%s at rows [row0+dy//s, +rows),
    # columns [dx//s, dx//s + wout).
    geom = [((dy % s) * s + dx % s, dy // s, dx // s)
            for dy in range(3) for dx in range(3)]
    # Taps are issued to the MXU in natural w2-row order; fused in pairs (K = 2*cmid_p)
    # on 256-deep MXUs (v6e/v7x), per-tap (K = cmid_p) on v5e's 128-deep MXU.
    step = 2 if pair_taps else 1
    chunks = [list(range(t, min(t + step, 9))) for t in range(0, 9, step)]

    def kernel(ph_ref, w2_ref, s3_ref, b3_ref, w3_ref, res_ref, *rest):
        if has_down:
            wd_ref, o_ref = rest
        else:
            (o_ref,) = rest
        row0 = pl.multiple_of(pl.program_id(1) * rows, rows)

        # Load each (phase plane, row offset) band of the resident phases block once;
        # the 9 taps are static column-shifted views of at most 3*s of these bands.
        band = {}

        def tap2d(t):
            p, qy, qx = geom[t]
            if (p, qy) not in band:
                band[(p, qy)] = ph_ref[p, pl.ds(row0 + qy, rows), :, :]
            return band[(p, qy)][:, qx:qx + wout, :].reshape(mo, cmid_p)

        # 3x3 conv as an accumulation of small-K MXU dots (no 9-tap concat temporary:
        # MXU pushes start after the first band load; peak VMEM stays ~1 tap-pair wide).
        h2 = None
        for chunk in chunks:
            mats = [tap2d(t) for t in chunk]
            lhs = mats[0] if len(mats) == 1 else jnp.concatenate(mats, axis=-1)
            rhs = w2_ref[chunk[0] * cmid_p:(chunk[-1] + 1) * cmid_p, :]
            d = jnp.dot(lhs, rhs, preferred_element_type=jnp.float32)
            h2 = d if h2 is None else h2 + d

        # BN3 + ReLU (f32 VPU) -> 1x1 conv3 (bf16 MXU, f32 accumulate) -> + shortcut.
        a3 = jnp.maximum(h2 * s3_ref[...] + b3_ref[...], 0.0)
        out = jnp.dot(a3.astype(w3_ref.dtype), w3_ref[...],
                      preferred_element_type=jnp.float32)
        res = res_ref[0].reshape(mo, res_ref.shape[-1])
        if has_down:        # fused 1x1 stride-s downsample conv on the raw-x shortcut
            out = out + jnp.dot(res, wd_ref[...], preferred_element_type=jnp.float32)
        else:               # identity shortcut
            out = out + res.astype(jnp.float32)
        o_ref[0] = out.reshape(rows, wout, out.shape[-1])

    return kernel


# ----------------------------- pallas_call wrappers ------------------------ #

def _stage1_call(x2d, s1, b1, w1, s2, b2, tm):
    mp, cin_p = x2d.shape
    cmid_p = w1.shape[1]
    flops = 2 * mp * cin_p * cmid_p
    bytes_accessed = mp * cin_p * 2 + mp * cmid_p * 2 + cin_p * cmid_p * 2
    vmem_need = (2 * tm * 2 * (cin_p + cmid_p)       # double-buffered bf16 in/out blocks
                 + cin_p * cmid_p * 2                # W1 (single-buffered)
                 + 2 * tm * max(cin_p, cmid_p) * 4)  # f32 temporaries (a1 / h1)
    return pl.pallas_call(
        _stage1_kernel,
        out_shape=jax.ShapeDtypeStruct((mp, cmid_p), MATMUL_DTYPE),
        grid=(mp // tm,),
        in_specs=[pl.BlockSpec((tm, cin_p), lambda i: (i, 0)),
                  pl.BlockSpec((1, cin_p), lambda i: (0, 0)),
                  pl.BlockSpec((1, cin_p), lambda i: (0, 0)),
                  # grid-invariant weight: single-buffered
                  pl.BlockSpec((cin_p, cmid_p), lambda i: (0, 0),
                               pipeline_mode=pl.Buffered(1)),
                  pl.BlockSpec((1, cmid_p), lambda i: (0, 0)),
                  pl.BlockSpec((1, cmid_p), lambda i: (0, 0))],
        out_specs=pl.BlockSpec((tm, cmid_p), lambda i: (i, 0)),
        compiler_params=pltpu.CompilerParams(
            dimension_semantics=("parallel",),
            vmem_limit_bytes=_vmem_limit(vmem_need)),
        cost_estimate=pl.CostEstimate(flops=int(flops), transcendentals=0,
                                      bytes_accessed=int(bytes_accessed)),
    )(x2d, s1, b1, w1, s2, b2)


def _stage2_call(phases, w2, s3, b3, w3, res_in, wd, *, stride, n, rows, hq, wq,
                 hout_p, wout, cmid_p, cout_p, pair_taps):
    s = stride
    has_down = wd is not None
    cres = res_in.shape[-1]
    n_strips = hout_p // rows
    mo = rows * wout
    kernel = _make_stage2_kernel(s, rows, wout, cmid_p, has_down, pair_taps)

    def const_spec(shape):      # grid-invariant weights: single-buffered (halves weight VMEM)
        return pl.BlockSpec(shape, lambda i, r: (0,) * len(shape),
                            pipeline_mode=pl.Buffered(1))

    in_specs = [
        # full phase image per n; constant index over the strip axis -> revolving buffer
        pl.BlockSpec((s * s, hq, wq, cmid_p), lambda i, r: (i, 0, 0, 0)),
        const_spec((9 * cmid_p, cmid_p)),                       # W2 (bf16)
        pl.BlockSpec((1, cmid_p), lambda i, r: (0, 0)),         # bn3 scale
        pl.BlockSpec((1, cmid_p), lambda i, r: (0, 0)),         # bn3 shift
        const_spec((cmid_p, cout_p)),                           # W3 (bf16)
        pl.BlockSpec((1, rows, wout, cres), lambda i, r: (i, r, 0, 0)),   # shortcut strip
    ]
    args = [phases, w2, s3, b3, w3, res_in]
    if has_down:
        in_specs.append(const_spec(wd.shape))                   # Wd (bf16)
        args.append(wd)

    flops = 2 * n * hout_p * wout * (9 * cmid_p * cmid_p + cmid_p * cout_p
                                     + (cres * cout_p if has_down else 0))
    bytes_accessed = (phases.size * 2 + w2.size * 2 + w3.size * 2
                      + (wd.size * 2 if has_down else 0)
                      + res_in.size * res_in.dtype.itemsize
                      + n * hout_p * wout * cout_p * 4)
    vmem_need = (2 * s * s * hq * wq * cmid_p * 2               # phases (double-buffered)
                 + 9 * cmid_p * cmid_p * 2 + cmid_p * cout_p * 2
                 + (cres * cout_p * 2 if has_down else 0)       # weights (single-buffered)
                 + 2 * mo * cres * res_in.dtype.itemsize        # residual strips
                 + 2 * mo * cout_p * 4                          # f32 output strips
                 + mo * (4 * cmid_p * 2 + 2 * cmid_p * 4 + cout_p * 4))   # in-kernel temps

    return pl.pallas_call(
        kernel,
        out_shape=jax.ShapeDtypeStruct((n, hout_p, wout, cout_p), jnp.float32),
        grid=(n, n_strips),
        in_specs=in_specs,
        out_specs=pl.BlockSpec((1, rows, wout, cout_p), lambda i, r: (i, r, 0, 0)),
        compiler_params=pltpu.CompilerParams(
            dimension_semantics=("parallel", "parallel"),
            vmem_limit_bytes=_vmem_limit(vmem_need)),
        cost_estimate=pl.CostEstimate(flops=int(flops), transcendentals=0,
                                      bytes_accessed=int(bytes_accessed)),
    )(*args)


# ----------------------------- module forward ------------------------------ #

def preact_bottleneck_forward(x_nchw, params, stride):
    """Pallas implementation of PreActBottleneck.forward (inference-mode BN).

    As in the reference module, the 1x1 downsample conv (when present) is applied to the
    raw input x (not to relu(bn1(x)))."""
    n, cin, h, w = x_nchw.shape
    cmid = params["w1"].shape[1]
    cout = params["w3"].shape[1]
    s = stride
    has_down = "wd" in params
    if not has_down and (s != 1 or cin != cout):
        raise ValueError("identity shortcut requires stride == 1 and cin == cout; "
                         "provide params['wd'] for a downsample shortcut")

    cin_p, cmid_p, cout_p = (_ceil_to(c, LANE) for c in (cin, cmid, cout))

    # NHWC, channels zero-padded to the lane width; activations carried as bf16 (BN/ReLU
    # math is f32 inside the kernels; bf16 is the MXU operand dtype anyway and halves the
    # HBM streams on bandwidth-bound v5e).  Padded channels stay exactly zero end-to-end.
    x = jnp.transpose(x_nchw, (0, 2, 3, 1))
    x = _pad_last(x, cin_p).astype(MATMUL_DTYPE)

    s1, b1 = _fold_bn(params["bn1"], cin_p)
    s2, b2 = _fold_bn(params["bn2"], cmid_p)
    s3, b3 = _fold_bn(params["bn3"], cmid_p)
    w1 = _pad2(params["w1"], cin_p, cmid_p).astype(MATMUL_DTYPE)
    w2 = jnp.pad(params["w2"], ((0, 0), (0, cmid_p - cmid), (0, cmid_p - cmid)))
    w2 = w2.reshape(9 * cmid_p, cmid_p).astype(MATMUL_DTYPE)
    w3 = _pad2(params["w3"], cmid_p, cout_p).astype(MATMUL_DTYPE)

    # ---- stage 1: a2 = relu(bn2(conv1(relu(bn1(x)))))  (one fused kernel) ----------
    m = n * h * w
    tm, mp = _row_tiling(m, cin_p, cmid_p)
    x2d = x.reshape(m, cin_p)
    if mp != m:                                    # row-pad so any N*H*W works
        x2d = jnp.pad(x2d, ((0, mp - m), (0, 0)))
    a2 = _stage1_call(x2d, s1, b1, w1, s2, b2, tm)[:m].reshape(n, h, w, cmid_p)

    # ---- output geometry and stage-2 row-strip tiling --------------------------------
    hout = (h - 1) // s + 1
    wout = (w - 1) // s + 1
    rows = _pick_rows(hout, wout)
    hout_p = _ceil_to(hout, rows)

    # ---- spatial pad (conv padding=1) + space-to-depth phase relayout so the ---------
    # ---- stage-2 kernel only needs contiguous row-band slices for its 9 taps. --------
    halo = 2 // s
    hq = hout_p + halo
    wq = _ceil_to(w + 2, s) // s
    hpp, wpp = hq * s, wq * s
    a2p = jnp.pad(a2, ((0, 0), (1, hpp - (h + 1)), (1, wpp - (w + 1)), (0, 0)))
    phases = a2p.reshape(n, hq, s, wq, s, cmid_p).transpose(0, 2, 4, 1, 3, 5)
    phases = phases.reshape(n * s * s, hq, wq, cmid_p)

    # ---- shortcut operand (raw x, as in the reference module) ------------------------
    if has_down:
        res_in = x[:, ::s, ::s, :]                 # (n, hout, wout, cin_p) bf16
        wd = _pad2(params["wd"], cin_p, cout_p).astype(MATMUL_DTYPE)
    else:
        res_in = x                                 # identity: (n, h, w, cout_p) bf16
        wd = None
    if hout_p != hout:
        res_in = jnp.pad(res_in, ((0, 0), (0, hout_p - hout), (0, 0), (0, 0)))

    # ---- stage 2: 3x3 conv + bn3 + relu + conv3 + shortcut add (one fused kernel) ----
    out = _stage2_call(phases, w2, s3, b3, w3, res_in, wd,
                       stride=s, n=n, rows=rows, hq=hq, wq=wq, hout_p=hout_p,
                       wout=wout, cmid_p=cmid_p, cout_p=cout_p,
                       pair_taps=(not _is_v5()) and cmid_p <= 128)

    out = out[:, :hout, :, :cout]
    return jnp.transpose(out, (0, 3, 1, 2))        # -> NCHW f32


# ----------------------------- reference (pure JAX) ------------------------ #

def reference_forward(x_nchw, params, stride):
    """Pure-JAX reference with the module's structure and the same operand-precision
    policy as the kernels (bf16 block input and conv operands, f32 accumulation/BN)."""
    x = jnp.transpose(x_nchw, (0, 2, 3, 1)).astype(MATMUL_DTYPE).astype(jnp.float32)
    dn = ("NHWC", "HWIO", "NHWC")
    cmid = params["w1"].shape[1]

    def bn(y, p):
        return (y - p["mean"]) / jnp.sqrt(p["var"] + EPS) * p["gamma"] + p["beta"]

    def conv(a, w, strides, padding):
        return lax.conv_general_dilated(a.astype(MATMUL_DTYPE), w.astype(MATMUL_DTYPE),
                                        strides, padding, dimension_numbers=dn,
                                        preferred_element_type=jnp.float32)

    a1 = jax.nn.relu(bn(x, params["bn1"]))
    h1 = conv(a1, params["w1"][None, None], (1, 1), "VALID")
    a2 = jax.nn.relu(bn(h1, params["bn2"]))
    h2 = conv(a2, params["w2"].reshape(3, 3, cmid, cmid),
              (stride, stride), ((1, 1), (1, 1)))
    a3 = jax.nn.relu(bn(h2, params["bn3"]))
    h3 = conv(a3, params["w3"][None, None], (1, 1), "VALID")
    if "wd" in params:
        res = conv(x, params["wd"][None, None], (stride, stride), "VALID")
    else:
        res = x
    return jnp.transpose(h3 + res, (0, 3, 1, 2))


# ----------------------------- parameter init ------------------------------ #

def init_params(key, cin, cout, cmid, stride):
    ks = jax.random.split(key, 8)

    def bn_params(k, c):
        k0, k1, k2, k3 = jax.random.split(k, 4)
        return {
            "gamma": 1.0 + 0.1 * jax.random.normal(k0, (c,), jnp.float32),
            "beta": 0.1 * jax.random.normal(k1, (c,), jnp.float32),
            "mean": 0.1 * jax.random.normal(k2, (c,), jnp.float32),
            "var": 0.5 + jnp.abs(jax.random.normal(k3, (c,), jnp.float32)),
        }

    def conv_w(k, fan_in, fan_out):
        std = (2.0 / fan_out) ** 0.5
        return std * jax.random.normal(k, (fan_in, fan_out), jnp.float32)

    params = {
        "bn1": bn_params(ks[0], cin),
        "bn2": bn_params(ks[1], cmid),
        "bn3": bn_params(ks[2], cmid),
        "w1": conv_w(ks[3], cin, cmid),                       # 1x1: (Cin, Cmid)
        # 3x3 weights stored as (ky*3+kx, Cin, Cout) == HWIO flattened over the window
        "w2": ((2.0 / (cmid * 9)) ** 0.5)
              * jax.random.normal(ks[4], (9, cmid, cmid), jnp.float32),
        "w3": conv_w(ks[5], cmid, cout),                      # 1x1: (Cmid, Cout)
    }
    if stride != 1 or cin != cout:
        params["wd"] = conv_w(ks[6], cin, cout)               # downsample 1x1: (Cin, Cout)
    return params


# ----------------------------- main ---------------------------------------- #

if __name__ == "__main__":
    fwd = jax.jit(preact_bottleneck_forward, static_argnames=("stride",))
    key = jax.random.PRNGKey(0)

    # (N, Cin, H, W, Cout, stride): downsample shortcut, then identity shortcut.
    configs = [(2, 16, 16, 16, 32, 2),
               (2, 32, 8, 8, 32, 1)]
    for (n, cin, h, w, cout, stride) in configs:
        cmid = cout // 4
        key, kx, kp = jax.random.split(key, 3)
        x = jax.random.normal(kx, (n, cin, h, w), jnp.float32)   # NCHW, like PyTorch
        params = init_params(kp, cin, cout, cmid, stride)

        out = jax.block_until_ready(fwd(x, params, stride=stride))
        ref = jax.block_until_ready(reference_forward(x, params, stride))

        hout = (h - 1) // stride + 1
        assert out.shape == ref.shape == (n, cout, hout, hout), out.shape
        max_err = float(jnp.max(jnp.abs(out - ref)))
        # tolerance sized for the bf16 activation / bf16 MXU operand policy (f32 accumulate)
        # that kernel and reference share
        assert max_err < 2e-2, f"mismatch vs reference (stride={stride}), max_err={max_err}"

    print("KERNEL_OK")
</pallas_src>

<mosaic_0001>
module attributes {stable_mosaic.version = 11 : i64} {
  func.func @_stage1_kernel(%arg0: i32, %arg1: memref<256x128xbf16, #tpu.memory_space<vmem>>, %arg2: memref<1x128xf32, #tpu.memory_space<vmem>>, %arg3: memref<1x128xf32, #tpu.memory_space<vmem>>, %arg4: memref<128x128xbf16, #tpu.memory_space<vmem>>, %arg5: memref<1x128xf32, #tpu.memory_space<vmem>>, %arg6: memref<1x128xf32, #tpu.memory_space<vmem>>, %arg7: memref<256x128xbf16, #tpu.memory_space<vmem>>) attributes {dimension_semantics = [#tpu.dimension_semantics<parallel>], iteration_bounds = array<i64: 2>, scalar_prefetch = 0 : i64, scratch_operands = 0 : i64, tpu.core_type = #tpu.core_type<tc>, window_params = [{transform_indices = @transform_0, window_bounds = array<i64: 256, 128>}, {pipeline_mode = #tpu.pipeline_mode<synchronous>, transform_indices = @transform_1, window_bounds = array<i64: 1, 128>}, {pipeline_mode = #tpu.pipeline_mode<synchronous>, transform_indices = @transform_2, window_bounds = array<i64: 1, 128>}, {pipeline_mode = #tpu.pipeline_mode<synchronous>, transform_indices = @transform_3, window_bounds = array<i64: 128, 128>}, {pipeline_mode = #tpu.pipeline_mode<synchronous>, transform_indices = @transform_4, window_bounds = array<i64: 1, 128>}, {pipeline_mode = #tpu.pipeline_mode<synchronous>, transform_indices = @transform_5, window_bounds = array<i64: 1, 128>}, {transform_indices = @transform_6, window_bounds = array<i64: 256, 128>}]} {
    %c0 = arith.constant 0 : index
    %c0_0 = arith.constant 0 : index
    %0 = vector.load %arg1[%c0, %c0_0] : memref<256x128xbf16, #tpu.memory_space<vmem>>, vector<256x128xbf16>
    %1 = arith.extf %0 : vector<256x128xbf16> to vector<256x128xf32>
    %c0_1 = arith.constant 0 : index
    %c0_2 = arith.constant 0 : index
    %2 = vector.load %arg2[%c0_1, %c0_2] : memref<1x128xf32, #tpu.memory_space<vmem>>, vector<1x128xf32>
    %3 = vector.broadcast %2 : vector<1x128xf32> to vector<256x128xf32>
    %4 = arith.mulf %1, %3 : vector<256x128xf32>
    %c0_3 = arith.constant 0 : index
    %c0_4 = arith.constant 0 : index
    %5 = vector.load %arg3[%c0_3, %c0_4] : memref<1x128xf32, #tpu.memory_space<vmem>>, vector<1x128xf32>
    %6 = vector.broadcast %5 : vector<1x128xf32> to vector<256x128xf32>
    %7 = arith.addf %4, %6 : vector<256x128xf32>
    %cst = arith.constant 0.000000e+00 : f32
    %8 = vector.broadcast %cst : f32 to vector<256x128xf32>
    %9 = arith.maximumf %7, %8 : vector<256x128xf32>
    %10 = arith.truncf %9 : vector<256x128xf32> to vector<256x128xbf16>
    %c0_5 = arith.constant 0 : index
    %c0_6 = arith.constant 0 : index
    %11 = vector.load %arg4[%c0_5, %c0_6] : memref<128x128xbf16, #tpu.memory_space<vmem>>, vector<128x128xbf16>
    %cst_7 = arith.constant dense<0.000000e+00> : vector<256x128xf32>
    %12 = tpu.matmul %10, %11, %cst_7 {dimension_numbers = #tpu.dot_dimension_numbers<[1], [0], [0], [1], [0, 0, 1, 1], [], []>} : vector<256x128xbf16>, vector<128x128xbf16>, vector<256x128xf32> -> vector<256x128xf32>
    %c0_8 = arith.constant 0 : index
    %c0_9 = arith.constant 0 : index
    %13 = vector.load %arg5[%c0_8, %c0_9] : memref<1x128xf32, #tpu.memory_space<vmem>>, vector<1x128xf32>
    %14 = vector.broadcast %13 : vector<1x128xf32> to vector<256x128xf32>
    %15 = arith.mulf %12, %14 : vector<256x128xf32>
    %c0_10 = arith.constant 0 : index
    %c0_11 = arith.constant 0 : index
    %16 = vector.load %arg6[%c0_10, %c0_11] : memref<1x128xf32, #tpu.memory_space<vmem>>, vector<1x128xf32>
    %17 = vector.broadcast %16 : vector<1x128xf32> to vector<256x128xf32>
    %18 = arith.addf %15, %17 : vector<256x128xf32>
    %cst_12 = arith.constant 0.000000e+00 : f32
    %19 = vector.broadcast %cst_12 : f32 to vector<256x128xf32>
    %20 = arith.maximumf %18, %19 : vector<256x128xf32>
    %21 = arith.truncf %20 : vector<256x128xf32> to vector<256x128xbf16>
    %c0_13 = arith.constant 0 : index
    %c0_14 = arith.constant 0 : index
    %22 = vector.load %arg7[%c0_13, %c0_14] : memref<256x128xbf16, #tpu.memory_space<vmem>>, vector<256x128xbf16>
    tpu.vector_store %arg7[%c0_13, %c0_14], %21 {strides = array<i32>} : memref<256x128xbf16, #tpu.memory_space<vmem>>, vector<256x128xbf16>,
    return
  }
  func.func @transform_0(%arg0: i32) -> (i32, i32) {
    %c0_i32 = arith.constant 0 : i32
    %c0_i32_0 = arith.constant 0 : i32
    return %arg0, %c0_i32 : i32, i32
  }
  func.func @transform_1(%arg0: i32) -> (i32, i32) {
    %c0_i32 = arith.constant 0 : i32
    %c0_i32_0 = arith.constant 0 : i32
    %c0_i32_1 = arith.constant 0 : i32
    return %c0_i32, %c0_i32_0 : i32, i32
  }
  func.func @transform_2(%arg0: i32) -> (i32, i32) {
    %c0_i32 = arith.constant 0 : i32
    %c0_i32_0 = arith.constant 0 : i32
    %c0_i32_1 = arith.constant 0 : i32
    return %c0_i32, %c0_i32_0 : i32, i32
  }
  func.func @transform_3(%arg0: i32) -> (i32, i32) {
    %c0_i32 = arith.constant 0 : i32
    %c0_i32_0 = arith.constant 0 : i32
    %c0_i32_1 = arith.constant 0 : i32
    return %c0_i32, %c0_i32_0 : i32, i32
  }
  func.func @transform_4(%arg0: i32) -> (i32, i32) {
    %c0_i32 = arith.constant 0 : i32
    %c0_i32_0 = arith.constant 0 : i32
    %c0_i32_1 = arith.constant 0 : i32
    return %c0_i32, %c0_i32_0 : i32, i32
  }
  func.func @transform_5(%arg0: i32) -> (i32, i32) {
    %c0_i32 = arith.constant 0 : i32
    %c0_i32_0 = arith.constant 0 : i32
    %c0_i32_1 = arith.constant 0 : i32
    return %c0_i32, %c0_i32_0 : i32, i32
  }
  func.func @transform_6(%arg0: i32) -> (i32, i32) {
    %c0_i32 = arith.constant 0 : i32
    %c0_i32_0 = arith.constant 0 : i32
    return %arg0, %c0_i32 : i32, i32
  }
}

module attributes {stable_mosaic.version = 11 : i64} {
  func.func @kernel(%arg0: i32, %arg1: i32, %arg2: memref<4x9x9x128xbf16, #tpu.memory_space<vmem>>, %arg3: memref<1152x128xbf16, #tpu.memory_space<vmem>>, %arg4: memref<1x128xf32, #tpu.memory_space<vmem>>, %arg5: memref<1x128xf32, #tpu.memory_space<vmem>>, %arg6: memref<128x128xbf16, #tpu.memory_space<vmem>>, %arg7: memref<1x4x8x128xbf16, #tpu.memory_space<vmem>>, %arg8: memref<128x128xbf16, #tpu.memory_space<vmem>>, %arg9: memref<1x4x8x128xf32, #tpu.memory_space<vmem>>) attributes {dimension_semantics = [#tpu.dimension_semantics<parallel>, #tpu.dimension_semantics<parallel>], iteration_bounds = array<i64: 2, 2>, scalar_prefetch = 0 : i64, scratch_operands = 0 : i64, tpu.core_type = #tpu.core_type<tc>, window_params = [{transform_indices = @transform_0, window_bounds = array<i64: 4, 9, 9, 128>}, {pipeline_mode = #tpu.pipeline_mode<synchronous>, transform_indices = @transform_1, window_bounds = array<i64: 1152, 128>}, {pipeline_mode = #tpu.pipeline_mode<synchronous>, transform_indices = @transform_2, window_bounds = array<i64: 1, 128>}, {pipeline_mode = #tpu.pipeline_mode<synchronous>, transform_indices = @transform_3, window_bounds = array<i64: 1, 128>}, {pipeline_mode = #tpu.pipeline_mode<synchronous>, transform_indices = @transform_4, window_bounds = array<i64: 128, 128>}, {transform_indices = @transform_5, window_bounds = array<i64: 1, 4, 8, 128>}, {pipeline_mode = #tpu.pipeline_mode<synchronous>, transform_indices = @transform_6, window_bounds = array<i64: 128, 128>}, {transform_indices = @transform_7, window_bounds = array<i64: 1, 4, 8, 128>}]} {
    %c4_i32 = arith.constant 4 : i32
    %0 = arith.muli %arg1, %c4_i32 : i32
    %1 = tpu.assume_multiple %0, 4 : i32
    %c0_i32 = arith.constant 0 : i32
    %2 = arith.addi %1, %c0_i32 : i32
    %c0 = arith.constant 0 : index
    %3 = arith.index_cast %2 : i32 to index
    %c0_0 = arith.constant 0 : index
    %c0_1 = arith.constant 0 : index
    %4 = vector.load %arg2[%c0, %3, %c0_0, %c0_1] : memref<4x9x9x128xbf16, #tpu.memory_space<vmem>>, vector<1x4x9x128xbf16>
    %5 = vector.shape_cast %4 : vector<1x4x9x128xbf16> to vector<4x9x128xbf16>
    %6 = vector.extract_strided_slice %5 {offsets = [0, 0, 0], sizes = [4, 8, 128], strides = [1, 1, 1]} : vector<4x9x128xbf16> to vector<4x8x128xbf16>
    %7 = vector.shape_cast %6 : vector<4x8x128xbf16> to vector<32x128xbf16>
    %c0_i32_2 = arith.constant 0 : i32
    %8 = arith.addi %1, %c0_i32_2 : i32
    %c1 = arith.constant 1 : index
    %9 = arith.index_cast %8 : i32 to index
    %c0_3 = arith.constant 0 : index
    %c0_4 = arith.constant 0 : index
    %10 = vector.load %arg2[%c1, %9, %c0_3, %c0_4] : memref<4x9x9x128xbf16, #tpu.memory_space<vmem>>, vector<1x4x9x128xbf16>
    %11 = vector.shape_cast %10 : vector<1x4x9x128xbf16> to vector<4x9x128xbf16>
    %12 = vector.extract_strided_slice %11 {offsets = [0, 0, 0], sizes = [4, 8, 128], strides = [1, 1, 1]} : vector<4x9x128xbf16> to vector<4x8x128xbf16>
    %13 = vector.shape_cast %12 : vector<4x8x128xbf16> to vector<32x128xbf16>
    %14 = tpu.concatenate %7, %13 in 1 : vector<32x128xbf16>, vector<32x128xbf16> -> vector<32x256xbf16>
    %c0_5 = arith.constant 0 : index
    %c0_6 = arith.constant 0 : index
    %15 = vector.load %arg3[%c0_5, %c0_6] : memref<1152x128xbf16, #tpu.memory_space<vmem>>, vector<256x128xbf16>
    %cst = arith.constant dense<0.000000e+00> : vector<32x128xf32>
    %16 = tpu.matmul %14, %15, %cst {dimension_numbers = #tpu.dot_dimension_numbers<[1], [0], [0], [1], [0, 0, 1, 1], [], []>} : vector<32x256xbf16>, vector<256x128xbf16>, vector<32x128xf32> -> vector<32x128xf32>
    %17 = vector.extract_strided_slice %5 {offsets = [0, 1, 0], sizes = [4, 8, 128], strides = [1, 1, 1]} : vector<4x9x128xbf16> to vector<4x8x128xbf16>
    %18 = vector.shape_cast %17 : vector<4x8x128xbf16> to vector<32x128xbf16>
    %c0_i32_7 = arith.constant 0 : i32
    %19 = arith.addi %1, %c0_i32_7 : i32
    %c2 = arith.constant 2 : index
    %20 = arith.index_cast %19 : i32 to index
    %c0_8 = arith.constant 0 : index
    %c0_9 = arith.constant 0 : index
    %21 = vector.load %arg2[%c2, %20, %c0_8, %c0_9] : memref<4x9x9x128xbf16, #tpu.memory_space<vmem>>, vector<1x4x9x128xbf16>
    %22 = vector.shape_cast %21 : vector<1x4x9x128xbf16> to vector<4x9x128xbf16>
    %23 = vector.extract_strided_slice %22 {offsets = [0, 0, 0], sizes = [4, 8, 128], strides = [1, 1, 1]} : vector<4x9x128xbf16> to vector<4x8x128xbf16>
    %24 = vector.shape_cast %23 : vector<4x8x128xbf16> to vector<32x128xbf16>
    %25 = tpu.concatenate %18, %24 in 1 : vector<32x128xbf16>, vector<32x128xbf16> -> vector<32x256xbf16>
    %c256 = arith.constant 256 : index
    %c0_10 = arith.constant 0 : index
    %26 = vector.load %arg3[%c256, %c0_10] : memref<1152x128xbf16, #tpu.memory_space<vmem>>, vector<256x128xbf16>
    %cst_11 = arith.constant dense<0.000000e+00> : vector<32x128xf32>
    %27 = tpu.matmul %25, %26, %cst_11 {dimension_numbers = #tpu.dot_dimension_numbers<[1], [0], [0], [1], [0, 0, 1, 1], [], []>} : vector<32x256xbf16>, vector<256x128xbf16>, vector<32x128xf32> -> vector<32x128xf32>
    %28 = arith.addf %16, %27 : vector<32x128xf32>
    %c0_i32_12 = arith.constant 0 : i32
    %29 = arith.addi %1, %c0_i32_12 : i32
    %c3 = arith.constant 3 : index
    %30 = arith.index_cast %29 : i32 to index
    %c0_13 = arith.constant 0 : index
    %c0_14 = arith.constant 0 : index
    %31 = vector.load %arg2[%c3, %30, %c0_13, %c0_14] : memref<4x9x9x128xbf16, #tpu.memory_space<vmem>>, vector<1x4x9x128xbf16>
    %32 = vector.shape_cast %31 : vector<1x4x9x128xbf16> to vector<4x9x128xbf16>
    %33 = vector.extract_strided_slice %32 {offsets = [0, 0, 0], sizes = [4, 8, 128], strides = [1, 1, 1]} : vector<4x9x128xbf16> to vector<4x8x128xbf16>
    %34 = vector.shape_cast %33 : vector<4x8x128xbf16> to vector<32x128xbf16>
    %35 = vector.extract_strided_slice %22 {offsets = [0, 1, 0], sizes = [4, 8, 128], strides = [1, 1, 1]} : vector<4x9x128xbf16> to vector<4x8x128xbf16>
    %36 = vector.shape_cast %35 : vector<4x8x128xbf16> to vector<32x128xbf16>
    %37 = tpu.concatenate %34, %36 in 1 : vector<32x128xbf16>, vector<32x128xbf16> -> vector<32x256xbf16>
    %c512 = arith.constant 512 : index
    %c0_15 = arith.constant 0 : index
    %38 = vector.load %arg3[%c512, %c0_15] : memref<1152x128xbf16, #tpu.memory_space<vmem>>, vector<256x128xbf16>
    %cst_16 = arith.constant dense<0.000000e+00> : vector<32x128xf32>
    %39 = tpu.matmul %37, %38, %cst_16 {dimension_numbers = #tpu.dot_dimension_numbers<[1], [0], [0], [1], [0, 0, 1, 1], [], []>} : vector<32x256xbf16>, vector<256x128xbf16>, vector<32x128xf32> -> vector<32x128xf32>
    %40 = arith.addf %28, %39 : vector<32x128xf32>
    %c1_i32 = arith.constant 1 : i32
    %41 = arith.addi %1, %c1_i32 : i32
    %c0_17 = arith.constant 0 : index
    %42 = arith.index_cast %41 : i32 to index
    %c0_18 = arith.constant 0 : index
    %c0_19 = arith.constant 0 : index
    %43 = vector.load %arg2[%c0_17, %42, %c0_18, %c0_19] : memref<4x9x9x128xbf16, #tpu.memory_space<vmem>>, vector<1x4x9x128xbf16>
    %44 = vector.shape_cast %43 : vector<1x4x9x128xbf16> to vector<4x9x128xbf16>
    %45 = vector.extract_strided_slice %44 {offsets = [0, 0, 0], sizes = [4, 8, 128], strides = [1, 1, 1]} : vector<4x9x128xbf16> to vector<4x8x128xbf16>
    %46 = vector.shape_cast %45 : vector<4x8x128xbf16> to vector<32x128xbf16>
    %c1_i32_20 = arith.constant 1 : i32
    %47 = arith.addi %1, %c1_i32_20 : i32
    %c1_21 = arith.constant 1 : index
    %48 = arith.index_cast %47 : i32 to index
    %c0_22 = arith.constant 0 : index
    %c0_23 = arith.constant 0 : index
    %49 = vector.load %arg2[%c1_21, %48, %c0_22, %c0_23] : memref<4x9x9x128xbf16, #tpu.memory_space<vmem>>, vector<1x4x9x128xbf16>
    %50 = vector.shape_cast %49 : vector<1x4x9x128xbf16> to vector<4x9x128xbf16>
    %51 = vector.extract_strided_slice %50 {offsets = [0, 0, 0], sizes = [4, 8, 128], strides = [1, 1, 1]} : vector<4x9x128xbf16> to vector<4x8x128xbf16>
    %52 = vector.shape_cast %51 : vector<4x8x128xbf16> to vector<32x128xbf16>
    %53 = tpu.concatenate %46, %52 in 1 : vector<32x128xbf16>, vector<32x128xbf16> -> vector<32x256xbf16>
    %c768 = arith.constant 768 : index
    %c0_24 = arith.constant 0 : index
    %54 = vector.load %arg3[%c768, %c0_24] : memref<1152x128xbf16, #tpu.memory_space<vmem>>, vector<256x128xbf16>
    %cst_25 = arith.constant dense<0.000000e+00> : vector<32x128xf32>
    %55 = tpu.matmul %53, %54, %cst_25 {dimension_numbers = #tpu.dot_dimension_numbers<[1], [0], [0], [1], [0, 0, 1, 1], [], []>} : vector<32x256xbf16>, vector<256x128xbf16>, vector<32x128xf32> -> vector<32x128xf32>
    %56 = arith.addf %40, %55 : vector<32x128xf32>
    %57 = vector.extract_strided_slice %44 {offsets = [0, 1, 0], sizes = [4, 8, 128], strides = [1, 1, 1]} : vector<4x9x128xbf16> to vector<4x8x128xbf16>
    %58 = vector.shape_cast %57 : vector<4x8x128xbf16> to vector<32x128xbf16>
    %c1024 = arith.constant 1024 : index
    %c0_26 = arith.constant 0 : index
    %59 = vector.load %arg3[%c1024, %c0_26] : memref<1152x128xbf16, #tpu.memory_space<vmem>>, vector<128x128xbf16>
    %cst_27 = arith.constant dense<0.000000e+00> : vector<32x128xf32>
    %60 = tpu.matmul %58, %59, %cst_27 {dimension_numbers = #tpu.dot_dimension_numbers<[1], [0], [0], [1], [0, 0, 1, 1], [], []>} : vector<32x128xbf16>, vector<128x128xbf16>, vector<32x128xf32> -> vector<32x128xf32>
    %61 = arith.addf %56, %60 : vector<32x128xf32>
    %c0_28 = arith.constant 0 : index
    %c0_29 = arith.constant 0 : index
    %62 = vector.load %arg4[%c0_28, %c0_29] : memref<1x128xf32, #tpu.memory_space<vmem>>, vector<1x128xf32>
    %63 = vector.broadcast %62 : vector<1x128xf32> to vector<32x128xf32>
    %64 = arith.mulf %61, %63 : vector<32x128xf32>
    %c0_30 = arith.constant 0 : index
    %c0_31 = arith.constant 0 : index
    %65 = vector.load %arg5[%c0_30, %c0_31] : memref<1x128xf32, #tpu.memory_space<vmem>>, vector<1x128xf32>
    %66 = vector.broadcast %65 : vector<1x128xf32> to vector<32x128xf32>
    %67 = arith.addf %64, %66 : vector<32x128xf32>
    %cst_32 = arith.constant 0.000000e+00 : f32
    %68 = vector.broadcast %cst_32 : f32 to vector<32x128xf32>
    %69 = arith.maximumf %67, %68 : vector<32x128xf32>
    %70 = arith.truncf %69 : vector<32x128xf32> to vector<32x128xbf16>
    %c0_33 = arith.constant 0 : index
    %c0_34 = arith.constant 0 : index
    %71 = vector.load %arg6[%c0_33, %c0_34] : memref<128x128xbf16, #tpu.memory_space<vmem>>, vector<128x128xbf16>
    %cst_35 = arith.constant dense<0.000000e+00> : vector<32x128xf32>
    %72 = tpu.matmul %70, %71, %cst_35 {dimension_numbers = #tpu.dot_dimension_numbers<[1], [0], [0], [1], [0, 0, 1, 1], [], []>} : vector<32x128xbf16>, vector<128x128xbf16>, vector<32x128xf32> -> vector<32x128xf32>
    %c0_36 = arith.constant 0 : index
    %c0_37 = arith.constant 0 : index
    %c0_38 = arith.constant 0 : index
    %c0_39 = arith.constant 0 : index
    %73 = vector.load %arg7[%c0_36, %c0_37, %c0_38, %c0_39] : memref<1x4x8x128xbf16, #tpu.memory_space<vmem>>, vector<1x4x8x128xbf16>
    %74 = vector.shape_cast %73 : vector<1x4x8x128xbf16> to vector<4x8x128xbf16>
    %75 = vector.shape_cast %74 : vector<4x8x128xbf16> to vector<32x128xbf16>
    %c0_40 = arith.constant 0 : index
    %c0_41 = arith.constant 0 : index
    %76 = vector.load %arg8[%c0_40, %c0_41] : memref<128x128xbf16, #tpu.memory_space<vmem>>, vector<128x128xbf16>
    %cst_42 = arith.constant dense<0.000000e+00> : vector<32x128xf32>
    %77 = tpu.matmul %75, %76, %cst_42 {dimension_numbers = #tpu.dot_dimension_numbers<[1], [0], [0], [1], [0, 0, 1, 1], [], []>} : vector<32x128xbf16>, vector<128x128xbf16>, vector<32x128xf32> -> vector<32x128xf32>
    %78 = arith.addf %72, %77 : vector<32x128xf32>
    %79 = vector.shape_cast %78 : vector<32x128xf32> to vector<4x8x128xf32>
    %c0_43 = arith.constant 0 : index
    %c0_44 = arith.constant 0 : index
    %c0_45 = arith.constant 0 : index
    %c0_46 = arith.constant 0 : index
    %80 = vector.load %arg9[%c0_43, %c0_44, %c0_45, %c0_46] : memref<1x4x8x128xf32, #tpu.memory_space<vmem>>, vector<1x4x8x128xf32>
    %81 = vector.shape_cast %80 : vector<1x4x8x128xf32> to vector<4x8x128xf32>
    %82 = vector.shape_cast %79 : vector<4x8x128xf32> to vector<1x4x8x128xf32>
    tpu.vector_store %arg9[%c0_43, %c0_44, %c0_45, %c0_46], %82 {strides = array<i32>} : memref<1x4x8x128xf32, #tpu.memory_space<vmem>>, vector<1x4x8x128xf32>,
    return
  }
  func.func @transform_0(%arg0: i32, %arg1: i32) -> (i32, i32, i32, i32) {
    %c0_i32 = arith.constant 0 : i32
    %c0_i32_0 = arith.constant 0 : i32
    %c0_i32_1 = arith.constant 0 : i32
    %c0_i32_2 = arith.constant 0 : i32
    return %arg0, %c0_i32, %c0_i32_0, %c0_i32_1 : i32, i32, i32, i32
  }
  func.func @transform_1(%arg0: i32, %arg1: i32) -> (i32, i32) {
    %c0_i32 = arith.constant 0 : i32
    %c0_i32_0 = arith.constant 0 : i32
    %c0_i32_1 = arith.constant 0 : i32
    return %c0_i32, %c0_i32_0 : i32, i32
  }
  func.func @transform_2(%arg0: i32, %arg1: i32) -> (i32, i32) {
    %c0_i32 = arith.constant 0 : i32
    %c0_i32_0 = arith.constant 0 : i32
    %c0_i32_1 = arith.constant 0 : i32
    return %c0_i32, %c0_i32_0 : i32, i32
  }
  func.func @transform_3(%arg0: i32, %arg1: i32) -> (i32, i32) {
    %c0_i32 = arith.constant 0 : i32
    %c0_i32_0 = arith.constant 0 : i32
    %c0_i32_1 = arith.constant 0 : i32
    return %c0_i32, %c0_i32_0 : i32, i32
  }
  func.func @transform_4(%arg0: i32, %arg1: i32) -> (i32, i32) {
    %c0_i32 = arith.constant 0 : i32
    %c0_i32_0 = arith.constant 0 : i32
    %c0_i32_1 = arith.constant 0 : i32
    return %c0_i32, %c0_i32_0 : i32, i32
  }
  func.func @transform_5(%arg0: i32, %arg1: i32) -> (i32, i32, i32, i32) {
    %c0_i32 = arith.constant 0 : i32
    %c0_i32_0 = arith.constant 0 : i32
    %c0_i32_1 = arith.constant 0 : i32
    return %arg0, %arg1, %c0_i32, %c0_i32_0 : i32, i32, i32, i32
  }
  func.func @transform_6(%arg0: i32, %arg1: i32) -> (i32, i32) {
    %c0_i32 = arith.constant 0 : i32
    %c0_i32_0 = arith.constant 0 : i32
    %c0_i32_1 = arith.constant 0 : i32
    return %c0_i32, %c0_i32_0 : i32, i32
  }
  func.func @transform_7(%arg0: i32, %arg1: i32) -> (i32, i32, i32, i32) {
    %c0_i32 = arith.constant 0 : i32
    %c0_i32_0 = arith.constant 0 : i32
    %c0_i32_1 = arith.constant 0 : i32
    return %arg0, %arg1, %c0_i32, %c0_i32_0 : i32, i32, i32, i32
  }
}

</mosaic_0001>

<llo_original>
// kernel: preact_bottleneck_forward.2
$region0: #{preact_bottleneck_forward.2}
  #allocation0 [shape = 'u32[]', space=smem, size = 0x4, offset = 0x4, fixed_abs, tag = 'smem constant byte address 0x4 - core index']
  #allocation1 [shape = 'u32[144,128]{1,0:T(1,128)}', space=vmem, size = 0x12000, scoped, tag = 'internal scratch']
  %s0 = inlined_call_operand.vmem [shape: bf16[512,128], index: 0, kind: input, shape index: {}]
  %s1 = inlined_call_operand.vmem [shape: f32[1,128], index: 1, kind: input, shape index: {}]
  %s2 = inlined_call_operand.vmem [shape: f32[1,128], index: 2, kind: input, shape index: {}]
  %s3 = inlined_call_operand.vmem [shape: bf16[128,128], index: 3, kind: input, shape index: {}]
  %s4 = inlined_call_operand.vmem [shape: f32[1,128], index: 4, kind: input, shape index: {}]
  %s5 = inlined_call_operand.vmem [shape: f32[1,128], index: 5, kind: input, shape index: {}]
  %s6 = inlined_call_operand.vmem [shape: bf16[512,128], index: 6, kind: output, shape index: {}]
  %s7 = sld [smem:[#allocation0]]
  $region57: #{preact_bottleneck_forward.2} parent=0
    _
  %s9 = ssub.s32 1, %s7
  %s10 = scalar_select 0, %s9, %s7
  loop: start=0, step=1, limit=4
  $region2: #{preact_bottleneck_forward.2} parent=0 // loop_pre_header
    _
  $region3: #{preact_bottleneck_forward.2} parent=0 // loop_header
    %s12 = sphi 0, %s16
    %p13 = scmp.ge.s32.totalorder %s12, 4
    %s22 = sphi 0, %s24
    %s25 = sphi 0, %s22
    %s26 = sphi 0, %s25
    %s42 = sphi 0, %s26
    %s46 = sphi 0, %s46
    %s48 = sphi 0, %s46
    %s49 = sphi 0, %s48
    %s63 = sphi 0, %s49
    %s67 = sphi 0, %s67
    %s69 = sphi 0, %s67
    %s70 = sphi 0, %s69
    %s84 = sphi 0, %s70
    %s88 = sphi 0, %s88
    %s90 = sphi 0, %s88
    %s91 = sphi 0, %s90
    %s105 = sphi 0, %s91
    %s109 = sphi 0, %s109
    %s111 = sphi 0, %s109
    %s112 = sphi 0, %s111
    %s126 = sphi 0, %s112
    %s130 = sphi 0, %s130
    %s132 = sphi 0, %s130
    %s133 = sphi 0, %s132
    %s147 = sphi 0, %s133
    %s153 = sphi 0, %s155
    %s156 = sphi 0, %s153
    %s157 = sphi 0, %s156
    %s173 = sphi 0, %s157
  $region4: #{preact_bottleneck_forward.2} parent=0 // loop_header_branch
    %15 = sbr.rel (%p13) target = $region8
  $region5: #{preact_bottleneck_forward.2} parent=0 // loop_body
    %s17 = ssub.s32 %s12, 1
    %s18 = ssub.s32 %s12, 2
    %s19 = sadd.s32 %s12, 1
    %s20 = ssub.s32 %s12, %s19
    %p21 = scmp.eq.s32.totalorder %s20, 0
    %s23 = sadd.s32 %s22, 1
    %s24 = scalar_select %p21, %s22, %s23
    %p27 = pneg %p21
    %p28 = scmp.eq.s32.totalorder %s12, 1
    %p29 = por %p27, %p28
    %p30 = scmp.ne.s32.totalorder %s22, %s25
    %p31 = scmp.eq.s32.totalorder %s12, 0
    %p32 = por %p30, %p31
    %p33 = scmp.ne.s32.totalorder %s22, %s25
    %p34 = scmp.eq.s32.totalorder %s17, 1
    %p35 = por %p33, %p34
    %p36 = scmp.ne.s32.totalorder %s25, %s26
    %p37 = scmp.eq.s32.totalorder %s17, 0
    %p38 = por %p36, %p37
    %p39 = scmp.ne.s32.totalorder %s25, %s26
    %p40 = scmp.eq.s32.totalorder %s18, 1
    %p41 = por %p39, %p40
    %p43 = scmp.ne.s32.totalorder %s26, %s42
    %p44 = scmp.eq.s32.totalorder %s18, 0
    %p45 = por %p43, %p44
    %s47 = sadd.s32 %s46, 1
    %p50 = scmp.eq.s32.totalorder %s12, 1
    %p51 = scmp.ne.s32.totalorder %s46, %s48
    %p52 = scmp.eq.s32.totalorder %s12, 0
    %p53 = por %p51, %p52
    %p54 = scmp.ne.s32.totalorder %s46, %s48
    %p55 = scmp.eq.s32.totalorder %s17, 1
    %p56 = por %p54, %p55
    %p57 = scmp.ne.s32.totalorder %s48, %s49
    %p58 = scmp.eq.s32.totalorder %s17, 0
    %p59 = por %p57, %p58
    %p60 = scmp.ne.s32.totalorder %s48, %s49
    %p61 = scmp.eq.s32.totalorder %s18, 1
    %p62 = por %p60, %p61
    %p64 = scmp.ne.s32.totalorder %s49, %s63
    %p65 = scmp.eq.s32.totalorder %s18, 0
    %p66 = por %p64, %p65
    %s68 = sadd.s32 %s67, 1
    %p71 = scmp.eq.s32.totalorder %s12, 1
    %p72 = scmp.ne.s32.totalorder %s67, %s69
    %p73 = scmp.eq.s32.totalorder %s12, 0
    %p74 = por %p72, %p73
    %p75 = scmp.ne.s32.totalorder %s67, %s69
    %p76 = scmp.eq.s32.totalorder %s17, 1
    %p77 = por %p75, %p76
    %p78 = scmp.ne.s32.totalorder %s69, %s70
    %p79 = scmp.eq.s32.totalorder %s17, 0
    %p80 = por %p78, %p79
    %p81 = scmp.ne.s32.totalorder %s69, %s70
    %p82 = scmp.eq.s32.totalorder %s18, 1
    %p83 = por %p81, %p82
    %p85 = scmp.ne.s32.totalorder %s70, %s84
    %p86 = scmp.eq.s32.totalorder %s18, 0
    %p87 = por %p85, %p86
    %s89 = sadd.s32 %s88, 1
    %p92 = scmp.eq.s32.totalorder %s12, 1
    %p93 = scmp.ne.s32.totalorder %s88, %s90
    %p94 = scmp.eq.s32.totalorder %s12, 0
    %p95 = por %p93, %p94
    %p96 = scmp.ne.s32.totalorder %s88, %s90
    %p97 = scmp.eq.s32.totalorder %s17, 1
    %p98 = por %p96, %p97
    %p99 = scmp.ne.s32.totalorder %s90, %s91
    %p100 = scmp.eq.s32.totalorder %s17, 0
    %p101 = por %p99, %p100
    %p102 = scmp.ne.s32.totalorder %s90, %s91
    %p103 = scmp.eq.s32.totalorder %s18, 1
    %p104 = por %p102, %p103
    %p106 = scmp.ne.s32.totalorder %s91, %s105
    %p107 = scmp.eq.s32.totalorder %s18, 0
    %p108 = por %p106, %p107
    %s110 = sadd.s32 %s109, 1
    %p113 = scmp.eq.s32.totalorder %s12, 1
    %p114 = scmp.ne.s32.totalorder %s109, %s111
    %p115 = scmp.eq.s32.totalorder %s12, 0
    %p116 = por %p114, %p115
    %p117 = scmp.ne.s32.totalorder %s109, %s111
    %p118 = scmp.eq.s32.totalorder %s17, 1
    %p119 = por %p117, %p118
    %p120 = scmp.ne.s32.totalorder %s111, %s112
    %p121 = scmp.eq.s32.totalorder %s17, 0
    %p122 = por %p120, %p121
    %p123 = scmp.ne.s32.totalorder %s111, %s112
    %p124 = scmp.eq.s32.totalorder %s18, 1
    %p125 = por %p123, %p124
    %p127 = scmp.ne.s32.totalorder %s112, %s126
    %p128 = scmp.eq.s32.totalorder %s18, 0
    %p129 = por %p127, %p128
    %s131 = sadd.s32 %s130, 1
    %p134 = scmp.eq.s32.totalorder %s12, 1
    %p135 = scmp.ne.s32.totalorder %s130, %s132
    %p136 = scmp.eq.s32.totalorder %s12, 0
    %p137 = por %p135, %p136
    %p138 = scmp.ne.s32.totalorder %s130, %s132
    %p139 = scmp.eq.s32.totalorder %s17, 1
    %p140 = por %p138, %p139
    %p141 = scmp.ne.s32.totalorder %s132, %s133
    %p142 = scmp.eq.s32.totalorder %s17, 0
    %p143 = por %p141, %p142
    %p144 = scmp.ne.s32.totalorder %s132, %s133
    %p145 = scmp.eq.s32.totalorder %s18, 1
    %p146 = por %p144, %p145
    %p148 = scmp.ne.s32.totalorder %s133, %s147
    %p149 = scmp.eq.s32.totalorder %s18, 0
    %p150 = por %p148, %p149
    %s151 = ssub.s32 %s12, %s19
    %p152 = scmp.eq.s32.totalorder %s151, 0
    %s154 = sadd.s32 %s153, 1
    %s155 = scalar_select %p152, %s153, %s154
    %p158 = pneg %p152
    %p159 = scmp.eq.s32.totalorder %s12, 1
    %p160 = por %p158, %p159
    %p161 = scmp.ne.s32.totalorder %s153, %s156
    %p162 = scmp.eq.s32.totalorder %s12, 0
    %p163 = por %p161, %p162
    %p164 = scmp.ne.s32.totalorder %s153, %s156
    %p165 = scmp.eq.s32.totalorder %s17, 1
    %p166 = por %p164, %p165
    %p167 = scmp.ne.s32.totalorder %s156, %s157
    %p168 = scmp.eq.s32.totalorder %s17, 0
    %p169 = por %p167, %p168
    %p170 = scmp.ne.s32.totalorder %s156, %s157
    %p171 = scmp.eq.s32.totalorder %s18, 1
    %p172 = por %p170, %p171
    %p174 = scmp.ne.s32.totalorder %s157, %s173
    %p175 = scmp.eq.s32.totalorder %s18, 0
    %p176 = por %p174, %p175
    %p177 = scmp.le.s32.totalorder 1, %s12
    %p178 = scmp.lt.s32.totalorder %s12, 3
    %p179 = pnand %p177, %p178
    %p180 = pneg %p179
    // Predicated region
    $region9: #{preact_bottleneck_forward.2} parent=5 // pred_check
      _
    $region10: #{preact_bottleneck_forward.2} parent=5 // pred_check_branch
      %182 = sbr.rel (%p179) target = $region12
    $region11: #{preact_bottleneck_forward.2} parent=5 // pred_region
      %s183 = ssub.s32 %s12, 1
      // Predicated region
      $region13: #{preact_bottleneck_forward.2} parent=11 // pred_check
        %p184 = pneg %p59
      $region14: #{preact_bottleneck_forward.2} parent=11 // pred_check_branch
        %186 = sbr.rel (%p184) target = $region16
      $region15: #{preact_bottleneck_forward.2} parent=11 // pred_region
        _
      $region16: #{preact_bottleneck_forward.2} parent=11 // pred_fallthru
        _
      // Predicated region
      $region17: #{preact_bottleneck_forward.2} parent=11 // pred_check
        %p187 = pneg %p80
      $region18: #{preact_bottleneck_forward.2} parent=11 // pred_check_branch
        %189 = sbr.rel (%p187) target = $region20
      $region19: #{preact_bottleneck_forward.2} parent=11 // pred_region
        _
      $region20: #{preact_bottleneck_forward.2} parent=11 // pred_fallthru
        _
      // Predicated region
      $region21: #{preact_bottleneck_forward.2} parent=11 // pred_check
        %p190 = pneg %p101
      $region22: #{preact_bottleneck_forward.2} parent=11 // pred_check_branch
        %192 = sbr.rel (%p190) target = $region24
      $region23: #{preact_bottleneck_forward.2} parent=11 // pred_region
        _
      $region24: #{preact_bottleneck_forward.2} parent=11 // pred_fallthru
        _
      // Predicated region
      $region25: #{preact_bottleneck_forward.2} parent=11 // pred_check
        %p193 = pneg %p122
      $region26: #{preact_bottleneck_forward.2} parent=11 // pred_check_branch
        %195 = sbr.rel (%p193) target = $region28
      $region27: #{preact_bottleneck_forward.2} parent=11 // pred_region
        _
      $region28: #{preact_bottleneck_forward.2} parent=11 // pred_fallthru
        _
      // Predicated region
      $region29: #{preact_bottleneck_forward.2} parent=11 // pred_check
        %p196 = pneg %p143
      $region30: #{preact_bottleneck_forward.2} parent=11 // pred_check_branch
        %198 = sbr.rel (%p196) target = $region32
      $region31: #{preact_bottleneck_forward.2} parent=11 // pred_region
        _
      $region32: #{preact_bottleneck_forward.2} parent=11 // pred_fallthru
        _
    $region12: #{preact_bottleneck_forward.2} parent=5 // pred_fallthru
      _
    %p199 = scmp.lt.s32.totalorder %s12, 2
    // Predicated region
    $region33: #{preact_bottleneck_forward.2} parent=5 // pred_check
      %p200 = pneg %p199
    $region34: #{preact_bottleneck_forward.2} parent=5 // pred_check_branch
      %202 = sbr.rel (%p200) target = $region36
    $region35: #{preact_bottleneck_forward.2} parent=5 // pred_region
      // Predicated region
      $region37: #{preact_bottleneck_forward.2} parent=35 // pred_check
        %p203 = pneg %p32
      $region38: #{preact_bottleneck_forward.2} parent=35 // pred_check_branch
        %205 = sbr.rel (%p203) target = $region40
      $region39: #{preact_bottleneck_forward.2} parent=35 // pred_region
        %s206 = smul.u32 32, %s12
        %p207 = scmp.lt.s32.totalorder %s206, 63
        %s208 = scalar_select %p207, %s206, 63
        %s209 = smul.addr %s208, 4
        %s210 = scalar_lea.vmem %s0, %s209
        %s211 = smul.u32 32, %s12
      $region40: #{preact_bottleneck_forward.2} parent=35 // pred_fallthru
        _
    $region36: #{preact_bottleneck_forward.2} parent=5 // pred_fallthru
      _
    %p212 = scmp.le.s32.totalorder 1, %s12
    %p213 = scmp.lt.s32.totalorder %s12, 3
    %p214 = pnand %p212, %p213
    %p215 = pneg %p214
    // Predicated region
    $region41: #{preact_bottleneck_forward.2} parent=5 // pred_check
      _
    $region42: #{preact_bottleneck_forward.2} parent=5 // pred_check_branch
      %217 = sbr.rel (%p214) target = $region44
    $region43: #{preact_bottleneck_forward.2} parent=5 // pred_region
      %s218 = ssub.s32 %s12, 1
      %s219 = smul.u32 32, %s17
      %p220 = scmp.lt.s32.totalorder %s219, 63
      %s221 = scalar_select %p220, %s219, 63
      %s222 = smul.addr %s221, 4
      %s223 = scalar_lea.vmem %s0, %s222
      %p224 = pneg %p38
      %p225 = pneg %p35
      %p226 = pneg %p59
      %p227 = pneg %p56
      %p228 = pneg %p80
      %p229 = pneg %p77
      %p230 = pneg %p101
      %p231 = pneg %p98
      %p232 = pneg %p122
      %p233 = pneg %p119
      %p234 = pneg %p143
      %p235 = pneg %p140
      %p236 = pneg %p169
      %p237 = pneg %p166
      %s238 = smul.u32 32, %s17
      %p239 = scmp.lt.s32.totalorder %s238, 63
      %s240 = scalar_select %p239, %s238, 63
      %s241 = smul.addr %s240, 4
      %s242 = scalar_lea.vmem %s6, %s241
      %s243 = smul.u32 32, %s17
      %p244 = scmp.lt.s32.totalorder %s243, 63
      %s245 = scalar_select %p244, %s243, 63
      %s246 = smul.addr %s245, 4
      %s247 = scalar_lea.vmem %s0, %s246
      %s248 = smul.u32 32, %s17
      %s249 = smul.u32 32, %s17
      %p250 = scmp.lt.s32.totalorder %s249, 63
      %s251 = scalar_select %p250, %s249, 63
      %s252 = smul.addr %s251, 4
      %s253 = scalar_lea.vmem %s6, %s252
      %s254 = smul.u32 32, %s17
      %v256 = vld [vmem:[%s247] sm:$0xf]
      %v257 = vld [vmem:[%s247 + $0x4] sm:$0xf]
      %v258 = vld [vmem:[%s247 + $0x8] sm:$0xf]
      %v259 = vld [vmem:[%s247 + $0xc] sm:$0xf]
      %v260 = vld [vmem:[%s247 + $0x10] sm:$0xf]
      %v261 = vld [vmem:[%s247 + $0x14] sm:$0xf]
      %v262 = vld [vmem:[%s247 + $0x18] sm:$0xf]
      %v263 = vld [vmem:[%s247 + $0x1c] sm:$0xf]
      %v264 = vld [vmem:[%s247 + $0x20] sm:$0xf]
      %v265 = vld [vmem:[%s247 + $0x24] sm:$0xf]
      %v266 = vld [vmem:[%s247 + $0x28] sm:$0xf]
      %v267 = vld [vmem:[%s247 + $0x2c] sm:$0xf]
      %v268 = vld [vmem:[%s247 + $0x30] sm:$0xf]
      %v269 = vld [vmem:[%s247 + $0x34] sm:$0xf]
      %v270 = vld [vmem:[%s247 + $0x38] sm:$0xf]
      %v271 = vld [vmem:[%s247 + $0x3c] sm:$0xf]
      %v272 = vld [vmem:[%s247 + $0x40] sm:$0xf]
      %v273 = vld [vmem:[%s247 + $0x44] sm:$0xf]
      %v274 = vld [vmem:[%s247 + $0x48] sm:$0xf]
      %v275 = vld [vmem:[%s247 + $0x4c] sm:$0xf]
      %v276 = vld [vmem:[%s247 + $0x50] sm:$0xf]
      %v277 = vld [vmem:[%s247 + $0x54] sm:$0xf]
      %v278 = vld [vmem:[%s247 + $0x58] sm:$0xf]
      %v279 = vld [vmem:[%s247 + $0x5c] sm:$0xf]
      %v280 = vld [vmem:[%s247 + $0x60] sm:$0xf]
      %v281 = vld [vmem:[%s247 + $0x64] sm:$0xf]
      %v282 = vld [vmem:[%s247 + $0x68] sm:$0xf]
      %v283 = vld [vmem:[%s247 + $0x6c] sm:$0xf]
      %v284 = vld [vmem:[%s247 + $0x70] sm:$0xf]
      %v285 = vld [vmem:[%s247 + $0x74] sm:$0xf]
      %v286 = vld [vmem:[%s247 + $0x78] sm:$0xf]
      %v287 = vld [vmem:[%s247 + $0x7c] sm:$0xf]
      %v288 = vunpack.c.l.bf16 %v256
      %v289 = vunpack.c.l.bf16 %v257
      %v290 = vunpack.c.l.bf16 %v258
      %v291 = vunpack.c.l.bf16 %v259
      %v292 = vunpack.c.l.bf16 %v260
      %v293 = vunpack.c.l.bf16 %v261
      %v294 = vunpack.c.l.bf16 %v262
      %v295 = vunpack.c.l.bf16 %v263
      %v296 = vunpack.c.l.bf16 %v264
      %v297 = vunpack.c.l.bf16 %v265
      %v298 = vunpack.c.l.bf16 %v266
      %v299 = vunpack.c.l.bf16 %v267
      %v300 = vunpack.c.l.bf16 %v268
      %v301 = vunpack.c.l.bf16 %v269
      %v302 = vunpack.c.l.bf16 %v270
      %v303 = vunpack.c.l.bf16 %v271
      %v304 = vunpack.c.l.bf16 %v272
      %v305 = vunpack.c.l.bf16 %v273
      %v306 = vunpack.c.l.bf16 %v274
      %v307 = vunpack.c.l.bf16 %v275
      %v308 = vunpack.c.l.bf16 %v276
      %v309 = vunpack.c.l.bf16 %v277
      %v310 = vunpack.c.l.bf16 %v278
      %v311 = vunpack.c.l.bf16 %v279
      %v312 = vunpack.c.l.bf16 %v280
      %v313 = vunpack.c.l.bf16 %v281
      %v314 = vunpack.c.l.bf16 %v282
      %v315 = vunpack.c.l.bf16 %v283
      %v316 = vunpack.c.l.bf16 %v284
      %v317 = vunpack.c.l.bf16 %v285
      %v318 = vunpack.c.l.bf16 %v286
      %v319 = vunpack.c.l.bf16 %v287
      %v320 = vld [vmem:[%s1] sm:$0x1]
      %v322 = vlaneseq
      %v323 = vshrl.u32 %v322, 7
      %v324 = vsub.s32 0, %v323
      %v325 = vrot.slane %v320, %v324
      %v327 = vmul.f32 %v288, %v325
      %v328 = vmul.f32 %v289, %v325
      %v329 = vmul.f32 %v290, %v325
      %v330 = vmul.f32 %v291, %v325
      %v331 = vmul.f32 %v292, %v325
      %v332 = vmul.f32 %v293, %v325
      %v333 = vmul.f32 %v294, %v325
      %v334 = vmul.f32 %v295, %v325
      %v335 = vmul.f32 %v296, %v325
      %v336 = vmul.f32 %v297, %v325
      %v337 = vmul.f32 %v298, %v325
      %v338 = vmul.f32 %v299, %v325
      %v339 = vmul.f32 %v300, %v325
      %v340 = vmul.f32 %v301, %v325
      %v341 = vmul.f32 %v302, %v325
      %v342 = vmul.f32 %v303, %v325
      %v343 = vmul.f32 %v304, %v325
      %v344 = vmul.f32 %v305, %v325
      %v345 = vmul.f32 %v306, %v325
      %v346 = vmul.f32 %v307, %v325
      %v347 = vmul.f32 %v308, %v325
      %v348 = vmul.f32 %v309, %v325
      %v349 = vmul.f32 %v310, %v325
      %v350 = vmul.f32 %v311, %v325
      %v351 = vmul.f32 %v312, %v325
      %v352 = vmul.f32 %v313, %v325
      %v353 = vmul.f32 %v314, %v325
      %v354 = vmul.f32 %v315, %v325
      %v355 = vmul.f32 %v316, %v325
      %v356 = vmul.f32 %v317, %v325
      %v357 = vmul.f32 %v318, %v325
      %v358 = vmul.f32 %v319, %v325
      %v359 = vld [vmem:[%s2] sm:$0x1]
      %v361 = vlaneseq
      %v362 = vshrl.u32 %v361, 7
      %v363 = vsub.s32 0, %v362
      %v364 = vrot.slane %v359, %v363
      %v366 = vadd.f32 %v327, %v364
      %v367 = vadd.f32 %v328, %v364
      %v368 = vadd.f32 %v329, %v364
      %v369 = vadd.f32 %v330, %v364
      %v370 = vadd.f32 %v331, %v364
      %v371 = vadd.f32 %v332, %v364
      %v372 = vadd.f32 %v333, %v364
      %v373 = vadd.f32 %v334, %v364
      %v374 = vadd.f32 %v335, %v364
      %v375 = vadd.f32 %v336, %v364
      %v376 = vadd.f32 %v337, %v364
      %v377 = vadd.f32 %v338, %v364
      %v378 = vadd.f32 %v339, %v364
      %v379 = vadd.f32 %v340, %v364
      %v380 = vadd.f32 %v341, %v364
      %v381 = vadd.f32 %v342, %v364
      %v382 = vadd.f32 %v343, %v364
      %v383 = vadd.f32 %v344, %v364
      %v384 = vadd.f32 %v345, %v364
      %v385 = vadd.f32 %v346, %v364
      %v386 = vadd.f32 %v347, %v364
      %v387 = vadd.f32 %v348, %v364
      %v388 = vadd.f32 %v349, %v364
      %v389 = vadd.f32 %v350, %v364
      %v390 = vadd.f32 %v351, %v364
      %v391 = vadd.f32 %v352, %v364
      %v392 = vadd.f32 %v353, %v364
      %v393 = vadd.f32 %v354, %v364
      %v394 = vadd.f32 %v355, %v364
      %v395 = vadd.f32 %v356, %v364
      %v396 = vadd.f32 %v357, %v364
      %v397 = vadd.f32 %v358, %v364
      %v398 = vmax.f32 %v366, 0.0
      %v399 = vmax.f32 %v367, 0.0
      %v400 = vmax.f32 %v368, 0.0
      %v401 = vmax.f32 %v369, 0.0
      %v402 = vmax.f32 %v370, 0.0
      %v403 = vmax.f32 %v371, 0.0
      %v404 = vmax.f32 %v372, 0.0
      %v405 = vmax.f32 %v373, 0.0
      %v406 = vmax.f32 %v374, 0.0
      %v407 = vmax.f32 %v375, 0.0
      %v408 = vmax.f32 %v376, 0.0
      %v409 = vmax.f32 %v377, 0.0
      %v410 = vmax.f32 %v378, 0.0
      %v411 = vmax.f32 %v379, 0.0
      %v412 = vmax.f32 %v380, 0.0
      %v413 = vmax.f32 %v381, 0.0
      %v414 = vmax.f32 %v382, 0.0
      %v415 = vmax.f32 %v383, 0.0
      %v416 = vmax.f32 %v384, 0.0
      %v417 = vmax.f32 %v385, 0.0
      %v418 = vmax.f32 %v386, 0.0
      %v419 = vmax.f32 %v387, 0.0
      %v420 = vmax.f32 %v388, 0.0
      %v421 = vmax.f32 %v389, 0.0
      %v422 = vmax.f32 %v390, 0.0
      %v423 = vmax.f32 %v391, 0.0
      %v424 = vmax.f32 %v392, 0.0
      %v425 = vmax.f32 %v393, 0.0
      %v426 = vmax.f32 %v394, 0.0
      %v427 = vmax.f32 %v395, 0.0
      %v428 = vmax.f32 %v396, 0.0
      %v429 = vmax.f32 %v397, 0.0
      %v430 = vpack.c.bf16 %v399, %v398
      %v431 = vpack.c.bf16 %v401, %v400
      %v432 = vpack.c.bf16 %v403, %v402
      %v433 = vpack.c.bf16 %v405, %v404
      %v434 = vpack.c.bf16 %v407, %v406
      %v435 = vpack.c.bf16 %v409, %v408
      %v436 = vpack.c.bf16 %v411, %v410
      %v437 = vpack.c.bf16 %v413, %v412
      %v438 = vpack.c.bf16 %v415, %v414
      %v439 = vpack.c.bf16 %v417, %v416
      %v440 = vpack.c.bf16 %v419, %v418
      %v441 = vpack.c.bf16 %v421, %v420
      %v442 = vpack.c.bf16 %v423, %v422
      %v443 = vpack.c.bf16 %v425, %v424
      %v444 = vpack.c.bf16 %v427, %v426
      %v445 = vpack.c.bf16 %v429, %v428
      %v446 = vld [vmem:[%s3] sm:$0xf]
      %v447 = vld [vmem:[%s3 + $0x4] sm:$0xf]
      %v448 = vld [vmem:[%s3 + $0x8] sm:$0xf]
      %v449 = vld [vmem:[%s3 + $0xc] sm:$0xf]
      %v450 = vld [vmem:[%s3 + $0x10] sm:$0xf]
      %v451 = vld [vmem:[%s3 + $0x14] sm:$0xf]
      %v452 = vld [vmem:[%s3 + $0x18] sm:$0xf]
      %v453 = vld [vmem:[%s3 + $0x1c] sm:$0xf]
      %v454 = vld [vmem:[%s3 + $0x20] sm:$0xf]
      %v455 = vld [vmem:[%s3 + $0x24] sm:$0xf]
      %v456 = vld [vmem:[%s3 + $0x28] sm:$0xf]
      %v457 = vld [vmem:[%s3 + $0x2c] sm:$0xf]
      %v458 = vld [vmem:[%s3 + $0x30] sm:$0xf]
      %v459 = vld [vmem:[%s3 + $0x34] sm:$0xf]
      %v460 = vld [vmem:[%s3 + $0x38] sm:$0xf]
      %v461 = vld [vmem:[%s3 + $0x3c] sm:$0xf]
      %v478 = vunpack.c.l.b16 %v446
      %v479 = vunpack.c.l.b16 %v447
      %v480 = vunpack.c.l.b16 %v448
      %v481 = vunpack.c.l.b16 %v449
      %v482 = vunpack.c.l.b16 %v450
      %v483 = vunpack.c.l.b16 %v451
      %v484 = vunpack.c.l.b16 %v452
      %v485 = vunpack.c.l.b16 %v453
      %v486 = vunpack.c.l.b16 %v454
      %v487 = vunpack.c.l.b16 %v455
      %v488 = vunpack.c.l.b16 %v456
      %v489 = vunpack.c.l.b16 %v457
      %v490 = vunpack.c.l.b16 %v458
      %v491 = vunpack.c.l.b16 %v459
      %v492 = vunpack.c.l.b16 %v460
      %v493 = vunpack.c.l.b16 %v461
      %v494 = vpack.c.b16 %v479, %v478
      %v495 = vpack.c.b16 %v481, %v480
      %v496 = vpack.c.b16 %v483, %v482
      %v497 = vpack.c.b16 %v485, %v484
      %v498 = vpack.c.b16 %v487, %v486
      %v499 = vpack.c.b16 %v489, %v488
      %v500 = vpack.c.b16 %v491, %v490
      %v501 = vpack.c.b16 %v493, %v492
      %510 = vmatprep.subr.bf16.mxu0 0
      %511 = vmatpush1.bf16.msra.mxu0 %v494
      %512 = vmatprep.subr.bf16.mxu0 0
      %513 = vmatpush1.bf16.msra.mxu0 %v495
      %514 = vmatprep.subr.bf16.mxu0 0
      %515 = vmatpush1.bf16.msra.mxu0 %v496
      %516 = vmatprep.subr.bf16.mxu0 0
      %517 = vmatpush1.bf16.msra.mxu0 %v497
      %518 = vmatprep.subr.bf16.mxu0 0
      %519 = vmatpush1.bf16.msra.mxu0 %v498
      %520 = vmatprep.subr.bf16.mxu0 0
      %521 = vmatpush1.bf16.msra.mxu0 %v499
      %522 = vmatprep.subr.bf16.mxu0 0
      %523 = vmatpush1.bf16.msra.mxu0 %v500
      %524 = vmatprep.subr.bf16.mxu0 0
      %525 = vmatpush1.bf16.msra.mxu0 %v501
      %526 = vmatprep.subr.bf16.mxu0 0
      %527 = vmatpush1.bf16.msra.mxu0 0
      %528 = vmatprep.subr.bf16.mxu0 0
      %529 = vmatpush1.bf16.msra.mxu0 0
      %530 = vmatprep.subr.bf16.mxu0 0
      %531 = vmatpush1.bf16.msra.mxu0 0
      %532 = vmatprep.subr.bf16.mxu0 0
      %533 = vmatpush1.bf16.msra.mxu0 0
      %534 = vmatprep.subr.bf16.mxu0 0
      %535 = vmatpush1.bf16.msra.mxu0 0
      %536 = vmatprep.subr.bf16.mxu0 0
      %537 = vmatpush1.bf16.msra.mxu0 0
      %538 = vmatprep.subr.bf16.mxu0 0
      %539 = vmatpush1.bf16.msra.mxu0 0
      %540 = vmatprep.subr.bf16.mxu0 0
      %541 = vmatpush1.bf16.msra.mxu0 0
      %542 = vmatprep.mubr.bf16.mxu0 0
      %543 = vmatmul.mubr.bf16.gmra.mrb[0].mxu0 %v430
      %v544 = vpop.f32.mrb[0].mxu0
      %v545 = vadd.f32 0.0, %v544
      %v546 = vpop.f32.mrb[0].mxu0
      %v547 = vpop.f32.mrb[0].mxu0
      %v548 = vadd.f32 0.0, %v547
      %v549 = vpop.f32.mrb[0].mxu0
      %550 = vmatprep.mubr.bf16.mxu0 0
      %551 = vmatmul.mubr.bf16.gmra.mrb[0].mxu0 %v431
      %v552 = vpop.f32.mrb[0].mxu0
      %v553 = vadd.f32 0.0, %v552
      %v554 = vpop.f32.mrb[0].mxu0
      %v555 = vpop.f32.mrb[0].mxu0
      %v556 = vadd.f32 0.0, %v555
      %v557 = vpop.f32.mrb[0].mxu0
      %558 = vmatprep.mubr.bf16.mxu0 0
      %559 = vmatmul.mubr.bf16.gmra.mrb[0].mxu0 %v432
      %v560 = vpop.f32.mrb[0].mxu0
      %v561 = vadd.f32 0.0, %v560
      %v562 = vpop.f32.mrb[0].mxu0
      %v563 = vpop.f32.mrb[0].mxu0
      %v564 = vadd.f32 0.0, %v563
      %v565 = vpop.f32.mrb[0].mxu0
      %566 = vmatprep.mubr.bf16.mxu0 0
      %567 = vmatmul.mubr.bf16.gmra.mrb[0].mxu0 %v433
      %v568 = vpop.f32.mrb[0].mxu0
      %v569 = vadd.f32 0.0, %v568
      %v570 = vpop.f32.mrb[0].mxu0
      %v571 = vpop.f32.mrb[0].mxu0
      %v572 = vadd.f32 0.0, %v571
      %v573 = vpop.f32.mrb[0].mxu0
      %574 = vmatprep.mubr.bf16.mxu0 0
      %575 = vmatmul.mubr.bf16.gmra.mrb[0].mxu0 %v434
      %v576 = vpop.f32.mrb[0].mxu0
      %v577 = vadd.f32 0.0, %v576
      %v578 = vpop.f32.mrb[0].mxu0
      %v579 = vpop.f32.mrb[0].mxu0
      %v580 = vadd.f32 0.0, %v579
      %v581 = vpop.f32.mrb[0].mxu0
      %582 = vmatprep.mubr.bf16.mxu0 0
      %583 = vmatmul.mubr.bf16.gmra.mrb[0].mxu0 %v435
      %v584 = vpop.f32.mrb[0].mxu0
      %v585 = vadd.f32 0.0, %v584
      %v586 = vpop.f32.mrb[0].mxu0
      %v587 = vpop.f32.mrb[0].mxu0
      %v588 = vadd.f32 0.0, %v587
      %v589 = vpop.f32.mrb[0].mxu0
      %590 = vmatprep.mubr.bf16.mxu0 0
      %591 = vmatmul.mubr.bf16.gmra.mrb[0].mxu0 %v436
      %v592 = vpop.f32.mrb[0].mxu0
      %v593 = vadd.f32 0.0, %v592
      %v594 = vpop.f32.mrb[0].mxu0
      %v595 = vpop.f32.mrb[0].mxu0
      %v596 = vadd.f32 0.0, %v595
      %v597 = vpop.f32.mrb[0].mxu0
      %598 = vmatprep.mubr.bf16.mxu0 0
      %599 = vmatmul.mubr.bf16.gmra.mrb[0].mxu0 %v437
      %v600 = vpop.f32.mrb[0].mxu0
      %v601 = vadd.f32 0.0, %v600
      %v602 = vpop.f32.mrb[0].mxu0
      %v603 = vpop.f32.mrb[0].mxu0
      %v604 = vadd.f32 0.0, %v603
      %v605 = vpop.f32.mrb[0].mxu0
      %606 = vmatprep.mubr.bf16.mxu0 0
      %607 = vmatmul.mubr.bf16.gmra.mrb[0].mxu0 %v438
      %v608 = vpop.f32.mrb[0].mxu0
      %v609 = vadd.f32 0.0, %v608
      %v610 = vpop.f32.mrb[0].mxu0
      %v611 = vpop.f32.mrb[0].mxu0
      %v612 = vadd.f32 0.0, %v611
      %v613 = vpop.f32.mrb[0].mxu0
      %614 = vmatprep.mubr.bf16.mxu0 0
      %615 = vmatmul.mubr.bf16.gmra.mrb[0].mxu0 %v439
      %v616 = vpop.f32.mrb[0].mxu0
      %v617 = vadd.f32 0.0, %v616
      %v618 = vpop.f32.mrb[0].mxu0
      %v619 = vpop.f32.mrb[0].mxu0
      %v620 = vadd.f32 0.0, %v619
      %v621 = vpop.f32.mrb[0].mxu0
      %622 = vmatprep.mubr.bf16.mxu0 0
      %623 = vmatmul.mubr.bf16.gmra.mrb[0].mxu0 %v440
      %v624 = vpop.f32.mrb[0].mxu0
      %v625 = vadd.f32 0.0, %v624
      %v626 = vpop.f32.mrb[0].mxu0
      %v627 = vpop.f32.mrb[0].mxu0
      %v628 = vadd.f32 0.0, %v627
      %v629 = vpop.f32.mrb[0].mxu0
      %630 = vmatprep.mubr.bf16.mxu0 0
      %631 = vmatmul.mubr.bf16.gmra.mrb[0].mxu0 %v441
      %v632 = vpop.f32.mrb[0].mxu0
      %v633 = vadd.f32 0.0, %v632
      %v634 = vpop.f32.mrb[0].mxu0
      %v635 = vpop.f32.mrb[0].mxu0
      %v636 = vadd.f32 0.0, %v635
      %v637 = vpop.f32.mrb[0].mxu0
      %638 = vmatprep.mubr.bf16.mxu0 0
      %639 = vmatmul.mubr.bf16.gmra.mrb[0].mxu0 %v442
      %v640 = vpop.f32.mrb[0].mxu0
      %v641 = vadd.f32 0.0, %v640
      %v642 = vpop.f32.mrb[0].mxu0
      %v643 = vpop.f32.mrb[0].mxu0
      %v644 = vadd.f32 0.0, %v643
      %v645 = vpop.f32.mrb[0].mxu0
      %646 = vmatprep.mubr.bf16.mxu0 0
      %647 = vmatmul.mubr.bf16.gmra.mrb[0].mxu0 %v443
      %v648 = vpop.f32.mrb[0].mxu0
      %v649 = vadd.f32 0.0, %v648
      %v650 = vpop.f32.mrb[0].mxu0
      %v651 = vpop.f32.mrb[0].mxu0
      %v652 = vadd.f32 0.0, %v651
      %v653 = vpop.f32.mrb[0].mxu0
      %654 = vmatprep.mubr.bf16.mxu0 0
      %655 = vmatmul.mubr.bf16.gmra.mrb[0].mxu0 %v444
      %v656 = vpop.f32.mrb[0].mxu0
      %v657 = vadd.f32 0.0, %v656
      %v658 = vpop.f32.mrb[0].mxu0
      %v659 = vpop.f32.mrb[0].mxu0
      %v660 = vadd.f32 0.0, %v659
      %v661 = vpop.f32.mrb[0].mxu0
      %662 = vmatprep.mubr.bf16.mxu0 0
      %663 = vmatmul.mubr.bf16.gmra.mrb[0].mxu0 %v445
      %v664 = vpop.f32.mrb[0].mxu0
      %v665 = vadd.f32 0.0, %v664
      %v666 = vpop.f32.mrb[0].mxu0
      %v667 = vpop.f32.mrb[0].mxu0
      %v668 = vadd.f32 0.0, %v667
      %v669 = vpop.f32.mrb[0].mxu0
      %670 = vdwg.mxu0
      %v671 = vld [vmem:[%s4] sm:$0x1]
      %v673 = vlaneseq
      %v674 = vshrl.u32 %v673, 7
      %v675 = vsub.s32 0, %v674
      %v676 = vrot.slane %v671, %v675
      %v678 = vmul.f32 %v545, %v676
      %v679 = vmul.f32 %v548, %v676
      %v680 = vmul.f32 %v553, %v676
      %v681 = vmul.f32 %v556, %v676
      %v682 = vmul.f32 %v561, %v676
      %v683 = vmul.f32 %v564, %v676
      %v684 = vmul.f32 %v569, %v676
      %v685 = vmul.f32 %v572, %v676
      %v686 = vmul.f32 %v577, %v676
      %v687 = vmul.f32 %v580, %v676
      %v688 = vmul.f32 %v585, %v676
      %v689 = vmul.f32 %v588, %v676
      %v690 = vmul.f32 %v593, %v676
      %v691 = vmul.f32 %v596, %v676
      %v692 = vmul.f32 %v601, %v676
      %v693 = vmul.f32 %v604, %v676
      %v694 = vmul.f32 %v609, %v676
      %v695 = vmul.f32 %v612, %v676
      %v696 = vmul.f32 %v617, %v676
      %v697 = vmul.f32 %v620, %v676
      %v698 = vmul.f32 %v625, %v676
      %v699 = vmul.f32 %v628, %v676
      %v700 = vmul.f32 %v633, %v676
      %v701 = vmul.f32 %v636, %v676
      %v702 = vmul.f32 %v641, %v676
      %v703 = vmul.f32 %v644, %v676
      %v704 = vmul.f32 %v649, %v676
      %v705 = vmul.f32 %v652, %v676
      %v706 = vmul.f32 %v657, %v676
      %v707 = vmul.f32 %v660, %v676
      %v708 = vmul.f32 %v665, %v676
      %v709 = vmul.f32 %v668, %v676
      %v710 = vld [vmem:[%s5] sm:$0x1]
      %v712 = vlaneseq
      %v713 = vshrl.u32 %v712, 7
      %v714 = vsub.s32 0, %v713
      %v715 = vrot.slane %v710, %v714
      %v717 = vadd.f32 %v678, %v715
      %v718 = vadd.f32 %v679, %v715
      %v719 = vadd.f32 %v680, %v715
      %v720 = vadd.f32 %v681, %v715
      %v721 = vadd.f32 %v682, %v715
      %v722 = vadd.f32 %v683, %v715
      %v723 = vadd.f32 %v684, %v715
      %v724 = vadd.f32 %v685, %v715
      %v725 = vadd.f32 %v686, %v715
      %v726 = vadd.f32 %v687, %v715
      %v727 = vadd.f32 %v688, %v715
      %v728 = vadd.f32 %v689, %v715
      %v729 = vadd.f32 %v690, %v715
      %v730 = vadd.f32 %v691, %v715
      %v731 = vadd.f32 %v692, %v715
      %v732 = vadd.f32 %v693, %v715
      %v733 = vadd.f32 %v694, %v715
      %v734 = vadd.f32 %v695, %v715
      %v735 = vadd.f32 %v696, %v715
      %v736 = vadd.f32 %v697, %v715
      %v737 = vadd.f32 %v698, %v715
      %v738 = vadd.f32 %v699, %v715
      %v739 = vadd.f32 %v700, %v715
      %v740 = vadd.f32 %v701, %v715
      %v741 = vadd.f32 %v702, %v715
      %v742 = vadd.f32 %v703, %v715
      %v743 = vadd.f32 %v704, %v715
      %v744 = vadd.f32 %v705, %v715
      %v745 = vadd.f32 %v706, %v715
      %v746 = vadd.f32 %v707, %v715
      %v747 = vadd.f32 %v708, %v715
      %v748 = vadd.f32 %v709, %v715
      %v749 = vmax.f32 %v717, 0.0
      %v750 = vmax.f32 %v718, 0.0
      %v751 = vmax.f32 %v719, 0.0
      %v752 = vmax.f32 %v720, 0.0
      %v753 = vmax.f32 %v721, 0.0
      %v754 = vmax.f32 %v722, 0.0
      %v755 = vmax.f32 %v723, 0.0
      %v756 = vmax.f32 %v724, 0.0
      %v757 = vmax.f32 %v725, 0.0
      %v758 = vmax.f32 %v726, 0.0
      %v759 = vmax.f32 %v727, 0.0
      %v760 = vmax.f32 %v728, 0.0
      %v761 = vmax.f32 %v729, 0.0
      %v762 = vmax.f32 %v730, 0.0
      %v763 = vmax.f32 %v731, 0.0
      %v764 = vmax.f32 %v732, 0.0
      %v765 = vmax.f32 %v733, 0.0
      %v766 = vmax.f32 %v734, 0.0
      %v767 = vmax.f32 %v735, 0.0
      %v768 = vmax.f32 %v736, 0.0
      %v769 = vmax.f32 %v737, 0.0
      %v770 = vmax.f32 %v738, 0.0
      %v771 = vmax.f32 %v739, 0.0
      %v772 = vmax.f32 %v740, 0.0
      %v773 = vmax.f32 %v741, 0.0
      %v774 = vmax.f32 %v742, 0.0
      %v775 = vmax.f32 %v743, 0.0
      %v776 = vmax.f32 %v744, 0.0
      %v777 = vmax.f32 %v745, 0.0
      %v778 = vmax.f32 %v746, 0.0
      %v779 = vmax.f32 %v747, 0.0
      %v780 = vmax.f32 %v748, 0.0
      %v781 = vpack.c.bf16 %v750, %v749
      %v782 = vpack.c.bf16 %v752, %v751
      %v783 = vpack.c.bf16 %v754, %v753
      %v784 = vpack.c.bf16 %v756, %v755
      %v785 = vpack.c.bf16 %v758, %v757
      %v786 = vpack.c.bf16 %v760, %v759
      %v787 = vpack.c.bf16 %v762, %v761
      %v788 = vpack.c.bf16 %v764, %v763
      %v789 = vpack.c.bf16 %v766, %v765
      %v790 = vpack.c.bf16 %v768, %v767
      %v791 = vpack.c.bf16 %v770, %v769
      %v792 = vpack.c.bf16 %v772, %v771
      %v793 = vpack.c.bf16 %v774, %v773
      %v794 = vpack.c.bf16 %v776, %v775
      %v795 = vpack.c.bf16 %v778, %v777
      %v796 = vpack.c.bf16 %v780, %v779
      %v813 = vunpack.c.l.b16 %v781
      %v814 = vunpack.c.h.b16 %v781
      %v815 = vunpack.c.l.b16 %v782
      %v816 = vunpack.c.h.b16 %v782
      %v817 = vunpack.c.l.b16 %v783
      %v818 = vunpack.c.h.b16 %v783
      %v819 = vunpack.c.l.b16 %v784
      %v820 = vunpack.c.h.b16 %v784
      %v821 = vunpack.c.l.b16 %v785
      %v822 = vunpack.c.h.b16 %v785
      %v823 = vunpack.c.l.b16 %v786
      %v824 = vunpack.c.h.b16 %v786
      %v825 = vunpack.c.l.b16 %v787
      %v826 = vunpack.c.h.b16 %v787
      %v827 = vunpack.c.l.b16 %v788
      %v828 = vunpack.c.h.b16 %v788
      %v829 = vunpack.c.l.b16 %v789
      %v830 = vunpack.c.h.b16 %v789
      %v831 = vunpack.c.l.b16 %v790
      %v832 = vunpack.c.h.b16 %v790
      %v833 = vunpack.c.l.b16 %v791
      %v834 = vunpack.c.h.b16 %v791
      %v835 = vunpack.c.l.b16 %v792
      %v836 = vunpack.c.h.b16 %v792
      %v837 = vunpack.c.l.b16 %v793
      %v838 = vunpack.c.h.b16 %v793
      %v839 = vunpack.c.l.b16 %v794
      %v840 = vunpack.c.h.b16 %v794
      %v841 = vunpack.c.l.b16 %v795
      %v842 = vunpack.c.h.b16 %v795
      %v843 = vunpack.c.l.b16 %v796
      %v844 = vunpack.c.h.b16 %v796
      %v845 = vpack.c.b16 %v813, %v813
      %v846 = vpack.c.b16 %v814, %v814
      %v847 = vpack.c.b16 %v815, %v815
      %v848 = vpack.c.b16 %v816, %v816
      %v849 = vpack.c.b16 %v817, %v817
      %v850 = vpack.c.b16 %v818, %v818
      %v851 = vpack.c.b16 %v819, %v819
      %v852 = vpack.c.b16 %v820, %v820
      %v853 = vpack.c.b16 %v821, %v821
      %v854 = vpack.c.b16 %v822, %v822
      %v855 = vpack.c.b16 %v823, %v823
      %v856 = vpack.c.b16 %v824, %v824
      %v857 = vpack.c.b16 %v825, %v825
      %v858 = vpack.c.b16 %v826, %v826
      %v859 = vpack.c.b16 %v827, %v827
      %v860 = vpack.c.b16 %v828, %v828
      %v861 = vpack.c.b16 %v829, %v829
      %v862 = vpack.c.b16 %v830, %v830
      %v863 = vpack.c.b16 %v831, %v831
      %v864 = vpack.c.b16 %v832, %v832
      %v865 = vpack.c.b16 %v833, %v833
      %v866 = vpack.c.b16 %v834, %v834
      %v867 = vpack.c.b16 %v835, %v835
      %v868 = vpack.c.b16 %v836, %v836
      %v869 = vpack.c.b16 %v837, %v837
      %v870 = vpack.c.b16 %v838, %v838
      %v871 = vpack.c.b16 %v839, %v839
      %v872 = vpack.c.b16 %v840, %v840
      %v873 = vpack.c.b16 %v841, %v841
      %v874 = vpack.c.b16 %v842, %v842
      %v875 = vpack.c.b16 %v843, %v843
      %v876 = vpack.c.b16 %v844, %v844
      %909 = vst [vmem:[%s253] sm:$0xf] %v845
      %910 = vst [vmem:[%s253 + $0x4] sm:$0xf] %v846
      %911 = vst [vmem:[%s253 + $0x8] sm:$0xf] %v847
      %912 = vst [vmem:[%s253 + $0xc] sm:$0xf] %v848
      %913 = vst [vmem:[%s253 + $0x10] sm:$0xf] %v849
      %914 = vst [vmem:[%s253 + $0x14] sm:$0xf] %v850
      %915 = vst [vmem:[%s253 + $0x18] sm:$0xf] %v851
      %916 = vst [vmem:[%s253 + $0x1c] sm:$0xf] %v852
      %917 = vst [vmem:[%s253 + $0x20] sm:$0xf] %v853
      %918 = vst [vmem:[%s253 + $0x24] sm:$0xf] %v854
      %919 = vst [vmem:[%s253 + $0x28] sm:$0xf] %v855
      %920 = vst [vmem:[%s253 + $0x2c] sm:$0xf] %v856
      %921 = vst [vmem:[%s253 + $0x30] sm:$0xf] %v857
      %922 = vst [vmem:[%s253 + $0x34] sm:$0xf] %v858
      %923 = vst [vmem:[%s253 + $0x38] sm:$0xf] %v859
      %924 = vst [vmem:[%s253 + $0x3c] sm:$0xf] %v860
      %925 = vst [vmem:[%s253 + $0x40] sm:$0xf] %v861
      %926 = vst [vmem:[%s253 + $0x44] sm:$0xf] %v862
      %927 = vst [vmem:[%s253 + $0x48] sm:$0xf] %v863
      %928 = vst [vmem:[%s253 + $0x4c] sm:$0xf] %v864
      %929 = vst [vmem:[%s253 + $0x50] sm:$0xf] %v865
      %930 = vst [vmem:[%s253 + $0x54] sm:$0xf] %v866
      %931 = vst [vmem:[%s253 + $0x58] sm:$0xf] %v867
      %932 = vst [vmem:[%s253 + $0x5c] sm:$0xf] %v868
      %933 = vst [vmem:[%s253 + $0x60] sm:$0xf] %v869
      %934 = vst [vmem:[%s253 + $0x64] sm:$0xf] %v870
      %935 = vst [vmem:[%s253 + $0x68] sm:$0xf] %v871
      %936 = vst [vmem:[%s253 + $0x6c] sm:$0xf] %v872
      %937 = vst [vmem:[%s253 + $0x70] sm:$0xf] %v873
      %938 = vst [vmem:[%s253 + $0x74] sm:$0xf] %v874
      %939 = vst [vmem:[%s253 + $0x78] sm:$0xf] %v875
      %940 = vst [vmem:[%s253 + $0x7c] sm:$0xf] %v876
      %s941 = smul.u32 32, %s17
      %p942 = scmp.lt.s32.totalorder %s941, 63
      %s943 = scalar_select %p942, %s941, 63
      %s944 = smul.addr %s943, 4
      %s945 = scalar_lea.vmem %s6, %s944
      // Predicated region
      $region45: #{preact_bottleneck_forward.2} parent=43 // pred_check
        %p946 = pneg %p166
      $region46: #{preact_bottleneck_forward.2} parent=43 // pred_check_branch
        %948 = sbr.rel (%p946) target = $region48
      $region47: #{preact_bottleneck_forward.2} parent=43 // pred_region
        %s949 = smul.u32 32, %s17
      $region48: #{preact_bottleneck_forward.2} parent=43 // pred_fallthru
        _
    $region44: #{preact_bottleneck_forward.2} parent=5 // pred_fallthru
      _
    %p950 = scmp.le.s32.totalorder 2, %s12
    // Predicated region
    $region49: #{preact_bottleneck_forward.2} parent=5 // pred_check
      %p951 = pneg %p950
    $region50: #{preact_bottleneck_forward.2} parent=5 // pred_check_branch
      %953 = sbr.rel (%p951) target = $region52
    $region51: #{preact_bottleneck_forward.2} parent=5 // pred_region
      %s954 = ssub.s32 %s12, 2
      // Predicated region
      $region53: #{preact_bottleneck_forward.2} parent=51 // pred_check
        %p955 = pneg %p172
      $region54: #{preact_bottleneck_forward.2} parent=51 // pred_check_branch
        %957 = sbr.rel (%p955) target = $region56
      $region55: #{preact_bottleneck_forward.2} parent=51 // pred_region
        %s958 = smul.u32 32, %s18
        %p959 = scmp.lt.s32.totalorder %s958, 63
        %s960 = scalar_select %p959, %s958, 63
        %s961 = smul.addr %s960, 4
        %s962 = scalar_lea.vmem %s6, %s961
      $region56: #{preact_bottleneck_forward.2} parent=51 // pred_fallthru
        _
    $region52: #{preact_bottleneck_forward.2} parent=5 // pred_fallthru
      _
  $region6: #{preact_bottleneck_forward.2} parent=0 // loop_footer
    %s16 = sadd.s32 1, %s12
  $region7: #{preact_bottleneck_forward.2} parent=0 // loop_footer_branch
    %11 = sbr.rel target = $region3
  $region8: #{preact_bottleneck_forward.2} parent=0 // loop_exit
    _

// kernel: preact_bottleneck_forward.3
$region0: #{preact_bottleneck_forward.3}
  #allocation0 [shape = 'u32[]', space=smem, size = 0x4, offset = 0x4, fixed_abs, tag = 'smem constant byte address 0x4 - core index']
  #allocation1 [shape = 'u32[144,128]{1,0:T(1,128)}', space=vmem, size = 0x12000, scoped, tag = 'internal scratch']
  %s0 = inlined_call_operand.vmem [shape: bf16[8,9,9,128], index: 0, kind: input, shape index: {}]
  %s1 = inlined_call_operand.vmem [shape: bf16[1152,128], index: 1, kind: input, shape index: {}]
  %s2 = inlined_call_operand.vmem [shape: f32[1,128], index: 2, kind: input, shape index: {}]
  %s3 = inlined_call_operand.vmem [shape: f32[1,128], index: 3, kind: input, shape index: {}]
  %s4 = inlined_call_operand.vmem [shape: bf16[128,128], index: 4, kind: input, shape index: {}]
  %s5 = inlined_call_operand.vmem [shape: bf16[2,8,8,128], index: 5, kind: input, shape index: {}]
  %s6 = inlined_call_operand.vmem [shape: bf16[128,128], index: 6, kind: input, shape index: {}]
  %s7 = inlined_call_operand.vmem [shape: f32[2,8,8,128], index: 7, kind: output, shape index: {}]
  %s8 = sld [smem:[#allocation0]]
  $region61: #{preact_bottleneck_forward.3} parent=0
    _
  %s10 = ssub.s32 1, %s8
  %s11 = scalar_select 0, %s10, %s8
  loop: start=0, step=1, limit=6
  $region2: #{preact_bottleneck_forward.3} parent=0 // loop_pre_header
    _
  $region3: #{preact_bottleneck_forward.3} parent=0 // loop_header
    %s13 = sphi 0, %s17
    %p14 = scmp.ge.s32.totalorder %s13, 6
    %s20 = sphi 0, %s32
    %s21 = sphi 0, %s28
    %s22 = sphi 0, %s20
    %s23 = sphi 0, %s21
    %s24 = sphi 0, %s22
    %s25 = sphi 0, %s23
    %s35 = sphi 0, %s37
    %s38 = sphi 0, %s35
    %s39 = sphi 0, %s38
    %s55 = sphi 0, %s39
    %s59 = sphi 0, %s59
    %s61 = sphi 0, %s59
    %s62 = sphi 0, %s61
    %s76 = sphi 0, %s62
    %s80 = sphi 0, %s80
    %s82 = sphi 0, %s80
    %s83 = sphi 0, %s82
    %s97 = sphi 0, %s83
    %s101 = sphi 0, %s101
    %s103 = sphi 0, %s101
    %s104 = sphi 0, %s103
    %s118 = sphi 0, %s104
    %s122 = sphi 0, %s122
    %s124 = sphi 0, %s122
    %s125 = sphi 0, %s124
    %s139 = sphi 0, %s125
    %s147 = sphi 0, %s149
    %s150 = sphi 0, %s147
    %s151 = sphi 0, %s150
    %s167 = sphi 0, %s151
    %s171 = sphi 0, %s171
    %s173 = sphi 0, %s171
    %s174 = sphi 0, %s173
    %s188 = sphi 0, %s174
    %s196 = sphi 0, %s198
    %s199 = sphi 0, %s196
    %s200 = sphi 0, %s199
    %s216 = sphi 0, %s200
  $region4: #{preact_bottleneck_forward.3} parent=0 // loop_header_branch
    %16 = sbr.rel (%p14) target = $region8
  $region5: #{preact_bottleneck_forward.3} parent=0 // loop_body
    %s18 = ssub.s32 %s13, 1
    %s19 = ssub.s32 %s13, 2
    %s26 = sadd.s32 1, %s21
    %p27 = scmp.ge.s32.totalorder %s26, 2
    %s28 = scalar_select %p27, 0, %s26
    %s29 = sadd.s32 1, %s20
    %s30 = scalar_select %p27, %s29, %s20
    %p31 = scmp.ge.s32.totalorder %s30, 2
    %s32 = scalar_select %p31, 0, %s30
    %s33 = ssub.s32 %s20, %s32
    %p34 = scmp.eq.s32.totalorder %s33, 0
    %s36 = sadd.s32 %s35, 1
    %s37 = scalar_select %p34, %s35, %s36
    %p40 = pneg %p34
    %p41 = scmp.eq.s32.totalorder %s13, 3
    %p42 = por %p40, %p41
    %p43 = scmp.ne.s32.totalorder %s35, %s38
    %p44 = scmp.eq.s32.totalorder %s13, 0
    %p45 = por %p43, %p44
    %p46 = scmp.ne.s32.totalorder %s35, %s38
    %p47 = scmp.eq.s32.totalorder %s18, 3
    %p48 = por %p46, %p47
    %p49 = scmp.ne.s32.totalorder %s38, %s39
    %p50 = scmp.eq.s32.totalorder %s18, 0
    %p51 = por %p49, %p50
    %p52 = scmp.ne.s32.totalorder %s38, %s39
    %p53 = scmp.eq.s32.totalorder %s19, 3
    %p54 = por %p52, %p53
    %p56 = scmp.ne.s32.totalorder %s39, %s55
    %p57 = scmp.eq.s32.totalorder %s19, 0
    %p58 = por %p56, %p57
    %s60 = sadd.s32 %s59, 1
    %p63 = scmp.eq.s32.totalorder %s13, 3
    %p64 = scmp.ne.s32.totalorder %s59, %s61
    %p65 = scmp.eq.s32.totalorder %s13, 0
    %p66 = por %p64, %p65
    %p67 = scmp.ne.s32.totalorder %s59, %s61
    %p68 = scmp.eq.s32.totalorder %s18, 3
    %p69 = por %p67, %p68
    %p70 = scmp.ne.s32.totalorder %s61, %s62
    %p71 = scmp.eq.s32.totalorder %s18, 0
    %p72 = por %p70, %p71
    %p73 = scmp.ne.s32.totalorder %s61, %s62
    %p74 = scmp.eq.s32.totalorder %s19, 3
    %p75 = por %p73, %p74
    %p77 = scmp.ne.s32.totalorder %s62, %s76
    %p78 = scmp.eq.s32.totalorder %s19, 0
    %p79 = por %p77, %p78
    %s81 = sadd.s32 %s80, 1
    %p84 = scmp.eq.s32.totalorder %s13, 3
    %p85 = scmp.ne.s32.totalorder %s80, %s82
    %p86 = scmp.eq.s32.totalorder %s13, 0
    %p87 = por %p85, %p86
    %p88 = scmp.ne.s32.totalorder %s80, %s82
    %p89 = scmp.eq.s32.totalorder %s18, 3
    %p90 = por %p88, %p89
    %p91 = scmp.ne.s32.totalorder %s82, %s83
    %p92 = scmp.eq.s32.totalorder %s18, 0
    %p93 = por %p91, %p92
    %p94 = scmp.ne.s32.totalorder %s82, %s83
    %p95 = scmp.eq.s32.totalorder %s19, 3
    %p96 = por %p94, %p95
    %p98 = scmp.ne.s32.totalorder %s83, %s97
    %p99 = scmp.eq.s32.totalorder %s19, 0
    %p100 = por %p98, %p99
    %s102 = sadd.s32 %s101, 1
    %p105 = scmp.eq.s32.totalorder %s13, 3
    %p106 = scmp.ne.s32.totalorder %s101, %s103
    %p107 = scmp.eq.s32.totalorder %s13, 0
    %p108 = por %p106, %p107
    %p109 = scmp.ne.s32.totalorder %s101, %s103
    %p110 = scmp.eq.s32.totalorder %s18, 3
    %p111 = por %p109, %p110
    %p112 = scmp.ne.s32.totalorder %s103, %s104
    %p113 = scmp.eq.s32.totalorder %s18, 0
    %p114 = por %p112, %p113
    %p115 = scmp.ne.s32.totalorder %s103, %s104
    %p116 = scmp.eq.s32.totalorder %s19, 3
    %p117 = por %p115, %p116
    %p119 = scmp.ne.s32.totalorder %s104, %s118
    %p120 = scmp.eq.s32.totalorder %s19, 0
    %p121 = por %p119, %p120
    %s123 = sadd.s32 %s122, 1
    %p126 = scmp.eq.s32.totalorder %s13, 3
    %p127 = scmp.ne.s32.totalorder %s122, %s124
    %p128 = scmp.eq.s32.totalorder %s13, 0
    %p129 = por %p127, %p128
    %p130 = scmp.ne.s32.totalorder %s122, %s124
    %p131 = scmp.eq.s32.totalorder %s18, 3
    %p132 = por %p130, %p131
    %p133 = scmp.ne.s32.totalorder %s124, %s125
    %p134 = scmp.eq.s32.totalorder %s18, 0
    %p135 = por %p133, %p134
    %p136 = scmp.ne.s32.totalorder %s124, %s125
    %p137 = scmp.eq.s32.totalorder %s19, 3
    %p138 = por %p136, %p137
    %p140 = scmp.ne.s32.totalorder %s125, %s139
    %p141 = scmp.eq.s32.totalorder %s19, 0
    %p142 = por %p140, %p141
    %s143 = ssub.s32 %s20, %s32
    %s144 = ssub.s32 %s21, %s28
    %s145 = sor.u32 %s143, %s144
    %p146 = scmp.eq.s32.totalorder %s145, 0
    %s148 = sadd.s32 %s147, 1
    %s149 = scalar_select %p146, %s147, %s148
    %p152 = pneg %p146
    %p153 = scmp.eq.s32.totalorder %s13, 3
    %p154 = por %p152, %p153
    %p155 = scmp.ne.s32.totalorder %s147, %s150
    %p156 = scmp.eq.s32.totalorder %s13, 0
    %p157 = por %p155, %p156
    %p158 = scmp.ne.s32.totalorder %s147, %s150
    %p159 = scmp.eq.s32.totalorder %s18, 3
    %p160 = por %p158, %p159
    %p161 = scmp.ne.s32.totalorder %s150, %s151
    %p162 = scmp.eq.s32.totalorder %s18, 0
    %p163 = por %p161, %p162
    %p164 = scmp.ne.s32.totalorder %s150, %s151
    %p165 = scmp.eq.s32.totalorder %s19, 3
    %p166 = por %p164, %p165
    %p168 = scmp.ne.s32.totalorder %s151, %s167
    %p169 = scmp.eq.s32.totalorder %s19, 0
    %p170 = por %p168, %p169
    %s172 = sadd.s32 %s171, 1
    %p175 = scmp.eq.s32.totalorder %s13, 3
    %p176 = scmp.ne.s32.totalorder %s171, %s173
    %p177 = scmp.eq.s32.totalorder %s13, 0
    %p178 = por %p176, %p177
    %p179 = scmp.ne.s32.totalorder %s171, %s173
    %p180 = scmp.eq.s32.totalorder %s18, 3
    %p181 = por %p179, %p180
    %p182 = scmp.ne.s32.totalorder %s173, %s174
    %p183 = scmp.eq.s32.totalorder %s18, 0
    %p184 = por %p182, %p183
    %p185 = scmp.ne.s32.totalorder %s173, %s174
    %p186 = scmp.eq.s32.totalorder %s19, 3
    %p187 = por %p185, %p186
    %p189 = scmp.ne.s32.totalorder %s174, %s188
    %p190 = scmp.eq.s32.totalorder %s19, 0
    %p191 = por %p189, %p190
    %s192 = ssub.s32 %s20, %s32
    %s193 = ssub.s32 %s21, %s28
    %s194 = sor.u32 %s192, %s193
    %p195 = scmp.eq.s32.totalorder %s194, 0
    %s197 = sadd.s32 %s196, 1
    %s198 = scalar_select %p195, %s196, %s197
    %p201 = pneg %p195
    %p202 = scmp.eq.s32.totalorder %s13, 3
    %p203 = por %p201, %p202
    %p204 = scmp.ne.s32.totalorder %s196, %s199
    %p205 = scmp.eq.s32.totalorder %s13, 0
    %p206 = por %p204, %p205
    %p207 = scmp.ne.s32.totalorder %s196, %s199
    %p208 = scmp.eq.s32.totalorder %s18, 3
    %p209 = por %p207, %p208
    %p210 = scmp.ne.s32.totalorder %s199, %s200
    %p211 = scmp.eq.s32.totalorder %s18, 0
    %p212 = por %p210, %p211
    %p213 = scmp.ne.s32.totalorder %s199, %s200
    %p214 = scmp.eq.s32.totalorder %s19, 3
    %p215 = por %p213, %p214
    %p217 = scmp.ne.s32.totalorder %s200, %s216
    %p218 = scmp.eq.s32.totalorder %s19, 0
    %p219 = por %p217, %p218
    %p220 = scmp.le.s32.totalorder 1, %s13
    %p221 = scmp.lt.s32.totalorder %s13, 5
    %p222 = pnand %p220, %p221
    %p223 = pneg %p222
    // Predicated region
    $region9: #{preact_bottleneck_forward.3} parent=5 // pred_check
      _
    $region10: #{preact_bottleneck_forward.3} parent=5 // pred_check_branch
      %225 = sbr.rel (%p222) target = $region12
    $region11: #{preact_bottleneck_forward.3} parent=5 // pred_region
      %s226 = ssub.s32 %s13, 1
      // Predicated region
      $region13: #{preact_bottleneck_forward.3} parent=11 // pred_check
        %p227 = pneg %p72
      $region14: #{preact_bottleneck_forward.3} parent=11 // pred_check_branch
        %229 = sbr.rel (%p227) target = $region16
      $region15: #{preact_bottleneck_forward.3} parent=11 // pred_region
        _
      $region16: #{preact_bottleneck_forward.3} parent=11 // pred_fallthru
        _
      // Predicated region
      $region17: #{preact_bottleneck_forward.3} parent=11 // pred_check
        %p230 = pneg %p93
      $region18: #{preact_bottleneck_forward.3} parent=11 // pred_check_branch
        %232 = sbr.rel (%p230) target = $region20
      $region19: #{preact_bottleneck_forward.3} parent=11 // pred_region
        _
      $region20: #{preact_bottleneck_forward.3} parent=11 // pred_fallthru
        _
      // Predicated region
      $region21: #{preact_bottleneck_forward.3} parent=11 // pred_check
        %p233 = pneg %p114
      $region22: #{preact_bottleneck_forward.3} parent=11 // pred_check_branch
        %235 = sbr.rel (%p233) target = $region24
      $region23: #{preact_bottleneck_forward.3} parent=11 // pred_region
        _
      $region24: #{preact_bottleneck_forward.3} parent=11 // pred_fallthru
        _
      // Predicated region
      $region25: #{preact_bottleneck_forward.3} parent=11 // pred_check
        %p236 = pneg %p135
      $region26: #{preact_bottleneck_forward.3} parent=11 // pred_check_branch
        %238 = sbr.rel (%p236) target = $region28
      $region27: #{preact_bottleneck_forward.3} parent=11 // pred_region
        _
      $region28: #{preact_bottleneck_forward.3} parent=11 // pred_fallthru
        _
      // Predicated region
      $region29: #{preact_bottleneck_forward.3} parent=11 // pred_check
        %p239 = pneg %p184
      $region30: #{preact_bottleneck_forward.3} parent=11 // pred_check_branch
        %241 = sbr.rel (%p239) target = $region32
      $region31: #{preact_bottleneck_forward.3} parent=11 // pred_region
        _
      $region32: #{preact_bottleneck_forward.3} parent=11 // pred_fallthru
        _
    $region12: #{preact_bottleneck_forward.3} parent=5 // pred_fallthru
      _
    %p242 = scmp.lt.s32.totalorder %s13, 4
    // Predicated region
    $region33: #{preact_bottleneck_forward.3} parent=5 // pred_check
      %p243 = pneg %p242
    $region34: #{preact_bottleneck_forward.3} parent=5 // pred_check_branch
      %245 = sbr.rel (%p243) target = $region36
    $region35: #{preact_bottleneck_forward.3} parent=5 // pred_region
      // Predicated region
      $region37: #{preact_bottleneck_forward.3} parent=35 // pred_check
        %p246 = pneg %p45
      $region38: #{preact_bottleneck_forward.3} parent=35 // pred_check_branch
        %248 = sbr.rel (%p246) target = $region40
      $region39: #{preact_bottleneck_forward.3} parent=35 // pred_region
        %s249 = smul.u32 4, %s20
        %p250 = scmp.lt.s32.totalorder %s249, 7
        %s251 = scalar_select %p250, %s249, 7
        %s252 = smul.addr %s251, 18
        %s253 = smul.addr %s252, 4
        %s254 = scalar_lea.vmem %s0, %s253
        %s255 = smul.u32 4, %s20
      $region40: #{preact_bottleneck_forward.3} parent=35 // pred_fallthru
        _
      // Predicated region
      $region41: #{preact_bottleneck_forward.3} parent=35 // pred_check
        %p256 = pneg %p157
      $region42: #{preact_bottleneck_forward.3} parent=35 // pred_check_branch
        %258 = sbr.rel (%p256) target = $region44
      $region43: #{preact_bottleneck_forward.3} parent=35 // pred_region
        %s259 = smul.u32 4, %s21
        %p260 = scmp.lt.s32.totalorder %s20, 1
        %s261 = scalar_select %p260, %s20, 1
        %p262 = scmp.lt.s32.totalorder %s259, 7
        %s263 = scalar_select %p262, %s259, 7
        %s264 = smul.addr %s261, 8
        %s265 = sadd.s32 %s263, %s264
        %s266 = smul.addr %s265, 4
        %s267 = scalar_lea.vmem %s5, %s266
        %s268 = smul.u32 4, %s21
      $region44: #{preact_bottleneck_forward.3} parent=35 // pred_fallthru
        _
    $region36: #{preact_bottleneck_forward.3} parent=5 // pred_fallthru
      _
    %p269 = scmp.le.s32.totalorder 1, %s13
    %p270 = scmp.lt.s32.totalorder %s13, 5
    %p271 = pnand %p269, %p270
    %p272 = pneg %p271
    // Predicated region
    $region45: #{preact_bottleneck_forward.3} parent=5 // pred_check
      _
    $region46: #{preact_bottleneck_forward.3} parent=5 // pred_check_branch
      %274 = sbr.rel (%p271) target = $region48
    $region47: #{preact_bottleneck_forward.3} parent=5 // pred_region
      %s275 = ssub.s32 %s13, 1
      %s276 = smul.u32 4, %s22
      %p277 = scmp.lt.s32.totalorder %s276, 7
      %s278 = scalar_select %p277, %s276, 7
      %s279 = smul.addr %s278, 18
      %s280 = smul.addr %s279, 4
      %s281 = scalar_lea.vmem %s0, %s280
      %p282 = pneg %p51
      %p283 = pneg %p48
      %p284 = pneg %p72
      %p285 = pneg %p69
      %p286 = pneg %p93
      %p287 = pneg %p90
      %p288 = pneg %p114
      %p289 = pneg %p111
      %p290 = pneg %p135
      %p291 = pneg %p132
      %s292 = smul.u32 4, %s23
      %p293 = scmp.lt.s32.totalorder %s22, 1
      %s294 = scalar_select %p293, %s22, 1
      %p295 = scmp.lt.s32.totalorder %s292, 7
      %s296 = scalar_select %p295, %s292, 7
      %s297 = smul.addr %s294, 8
      %s298 = sadd.s32 %s296, %s297
      %s299 = smul.addr %s298, 4
      %s300 = scalar_lea.vmem %s5, %s299
      %p301 = pneg %p163
      %p302 = pneg %p160
      %p303 = pneg %p184
      %p304 = pneg %p181
      %p305 = pneg %p212
      %p306 = pneg %p209
      %s307 = smul.u32 4, %s23
      %p308 = scmp.lt.s32.totalorder %s22, 1
      %s309 = scalar_select %p308, %s22, 1
      %p310 = scmp.lt.s32.totalorder %s307, 7
      %s311 = scalar_select %p310, %s307, 7
      %s312 = smul.addr %s309, 8
      %s313 = sadd.s32 %s311, %s312
      %s314 = smul.addr %s313, 8
      %s315 = scalar_lea.vmem %s7, %s314
      %s316 = smul.u32 4, %s22
      %p317 = scmp.lt.s32.totalorder %s316, 7
      %s318 = scalar_select %p317, %s316, 7
      %s319 = smul.addr %s318, 18
      %s320 = smul.addr %s319, 4
      %s321 = scalar_lea.vmem %s0, %s320
      %s322 = smul.u32 4, %s22
      %s323 = smul.u32 4, %s23
      %p324 = scmp.lt.s32.totalorder %s22, 1
      %s325 = scalar_select %p324, %s22, 1
      %p326 = scmp.lt.s32.totalorder %s323, 7
      %s327 = scalar_select %p326, %s323, 7
      %s328 = smul.addr %s325, 8
      %s329 = sadd.s32 %s327, %s328
      %s330 = smul.addr %s329, 4
      %s331 = scalar_lea.vmem %s5, %s330
      %s332 = smul.u32 4, %s23
      %s333 = smul.u32 4, %s23
      %p334 = scmp.lt.s32.totalorder %s22, 1
      %s335 = scalar_select %p334, %s22, 1
      %p336 = scmp.lt.s32.totalorder %s333, 7
      %s337 = scalar_select %p336, %s333, 7
      %s338 = smul.addr %s335, 8
      %s339 = sadd.s32 %s337, %s338
      %s340 = smul.addr %s339, 8
      %s341 = scalar_lea.vmem %s7, %s340
      %s342 = smul.u32 4, %s23
      %s344 = smul.u32 %s23, 4
      %s345 = smul.u32 %s344, 2
      %s346 = smul.addr %s345, 4
      %s347 = scalar_lea.vmem %s321, %s346
      %v348 = vld [vmem:[%s347] sm:$0xf]
      %v349 = vld [vmem:[%s347 + $0x4] sm:$0x1]
      %v350 = vld [vmem:[%s347 + $0x8] sm:$0xf]
      %v351 = vld [vmem:[%s347 + $0xc] sm:$0x1]
      %v352 = vld [vmem:[%s347 + $0x10] sm:$0xf]
      %v353 = vld [vmem:[%s347 + $0x14] sm:$0x1]
      %v354 = vld [vmem:[%s347 + $0x18] sm:$0xf]
      %v355 = vld [vmem:[%s347 + $0x1c] sm:$0x1]
      %s356 = sadd.s32 %s345, 18
      %s357 = smul.addr %s356, 4
      %s358 = scalar_lea.vmem %s321, %s357
      %v359 = vld [vmem:[%s358] sm:$0xf]
      %v360 = vld [vmem:[%s358 + $0x8] sm:$0xf]
      %v361 = vld [vmem:[%s358 + $0x10] sm:$0xf]
      %v362 = vld [vmem:[%s358 + $0x18] sm:$0xf]
      %v367 = vunpack.c.l.b16 %v348
      %v368 = vunpack.c.l.b16 %v350
      %v369 = vunpack.c.l.b16 %v352
      %v370 = vunpack.c.l.b16 %v354
      %v371 = vpack.c.b16 %v368, %v367
      %v372 = vpack.c.b16 %v370, %v369
      %v379 = vunpack.c.l.b16 %v359
      %v380 = vunpack.c.l.b16 %v360
      %v381 = vunpack.c.l.b16 %v361
      %v382 = vunpack.c.l.b16 %v362
      %v383 = vpack.c.b16 %v380, %v379
      %v384 = vpack.c.b16 %v382, %v381
      %v387 = vld [vmem:[%s1] sm:$0xf]
      %v388 = vld [vmem:[%s1 + $0x4] sm:$0xf]
      %v389 = vld [vmem:[%s1 + $0x8] sm:$0xf]
      %v390 = vld [vmem:[%s1 + $0xc] sm:$0xf]
      %v391 = vld [vmem:[%s1 + $0x10] sm:$0xf]
      %v392 = vld [vmem:[%s1 + $0x14] sm:$0xf]
      %v393 = vld [vmem:[%s1 + $0x18] sm:$0xf]
      %v394 = vld [vmem:[%s1 + $0x1c] sm:$0xf]
      %v395 = vld [vmem:[%s1 + $0x20] sm:$0xf]
      %v396 = vld [vmem:[%s1 + $0x24] sm:$0xf]
      %v397 = vld [vmem:[%s1 + $0x28] sm:$0xf]
      %v398 = vld [vmem:[%s1 + $0x2c] sm:$0xf]
      %v399 = vld [vmem:[%s1 + $0x30] sm:$0xf]
      %v400 = vld [vmem:[%s1 + $0x34] sm:$0xf]
      %v401 = vld [vmem:[%s1 + $0x38] sm:$0xf]
      %v402 = vld [vmem:[%s1 + $0x3c] sm:$0xf]
      %v403 = vld [vmem:[%s1 + $0x40] sm:$0xf]
      %v404 = vld [vmem:[%s1 + $0x44] sm:$0xf]
      %v405 = vld [vmem:[%s1 + $0x48] sm:$0xf]
      %v406 = vld [vmem:[%s1 + $0x4c] sm:$0xf]
      %v407 = vld [vmem:[%s1 + $0x50] sm:$0xf]
      %v408 = vld [vmem:[%s1 + $0x54] sm:$0xf]
      %v409 = vld [vmem:[%s1 + $0x58] sm:$0xf]
      %v410 = vld [vmem:[%s1 + $0x5c] sm:$0xf]
      %v411 = vld [vmem:[%s1 + $0x60] sm:$0xf]
      %v412 = vld [vmem:[%s1 + $0x64] sm:$0xf]
      %v413 = vld [vmem:[%s1 + $0x68] sm:$0xf]
      %v414 = vld [vmem:[%s1 + $0x6c] sm:$0xf]
      %v415 = vld [vmem:[%s1 + $0x70] sm:$0xf]
      %v416 = vld [vmem:[%s1 + $0x74] sm:$0xf]
      %v417 = vld [vmem:[%s1 + $0x78] sm:$0xf]
      %v418 = vld [vmem:[%s1 + $0x7c] sm:$0xf]
      %vm419 = vsmask.f32 3328
      %vm420 = vsmask.f32 7440
      %vm421 = vmor %vm419, %vm420
      %v423 = vshrl.u32 %v348, 16
      %v425 = vrot.slane %v423, 4
      %v426 = vshll.u32 %v348, 16
      %v428 = vrot.slane %v426, 5
      %v429 = vor.u32 %v425, %v428
      %v430 = vrot.slane %v429, 4
      %v432 = vshll.u32 %v349, 16
      %v434 = vrot.slane %v432, 5
      %v435 = vsel %vm421, %v430, %v434
      %v437 = vshrl.u32 %v350, 16
      %v439 = vrot.slane %v437, 4
      %v440 = vshll.u32 %v350, 16
      %v442 = vrot.slane %v440, 5
      %v443 = vor.u32 %v439, %v442
      %v444 = vrot.slane %v443, 4
      %v446 = vshll.u32 %v351, 16
      %v448 = vrot.slane %v446, 5
      %v449 = vsel %vm421, %v444, %v448
      %v451 = vshrl.u32 %v352, 16
      %v453 = vrot.slane %v451, 4
      %v454 = vshll.u32 %v352, 16
      %v456 = vrot.slane %v454, 5
      %v457 = vor.u32 %v453, %v456
      %v458 = vrot.slane %v457, 4
      %v460 = vshll.u32 %v353, 16
      %v462 = vrot.slane %v460, 5
      %v463 = vsel %vm421, %v458, %v462
      %v465 = vshrl.u32 %v354, 16
      %v467 = vrot.slane %v465, 4
      %v468 = vshll.u32 %v354, 16
      %v470 = vrot.slane %v468, 5
      %v471 = vor.u32 %v467, %v470
      %v472 = vrot.slane %v471, 4
      %v474 = vshll.u32 %v355, 16
      %v476 = vrot.slane %v474, 5
      %v477 = vsel %vm421, %v472, %v476
      %s478 = sadd.s32 %s345, 36
      %s479 = smul.addr %s478, 4
      %s480 = scalar_lea.vmem %s321, %s479
      %v481 = vld [vmem:[%s480] sm:$0xf]
      %v482 = vld [vmem:[%s480 + $0x4] sm:$0x1]
      %v483 = vld [vmem:[%s480 + $0x8] sm:$0xf]
      %v484 = vld [vmem:[%s480 + $0xc] sm:$0x1]
      %v485 = vld [vmem:[%s480 + $0x10] sm:$0xf]
      %v486 = vld [vmem:[%s480 + $0x14] sm:$0x1]
      %v487 = vld [vmem:[%s480 + $0x18] sm:$0xf]
      %v488 = vld [vmem:[%s480 + $0x1c] sm:$0x1]
      %v489 = vunpack.c.l.b16 %v435
      %v490 = vunpack.c.l.b16 %v449
      %v491 = vunpack.c.l.b16 %v463
      %v492 = vunpack.c.l.b16 %v477
      %v493 = vpack.c.b16 %v490, %v489
      %v494 = vpack.c.b16 %v492, %v491
      %v501 = vunpack.c.l.b16 %v481
      %v502 = vunpack.c.l.b16 %v483
      %v503 = vunpack.c.l.b16 %v485
      %v504 = vunpack.c.l.b16 %v487
      %v505 = vpack.c.b16 %v502, %v501
      %v506 = vpack.c.b16 %v504, %v503
      %v509 = vld [vmem:[%s1 + $0x80] sm:$0xf]
      %v510 = vld [vmem:[%s1 + $0x84] sm:$0xf]
      %v511 = vld [vmem:[%s1 + $0x88] sm:$0xf]
      %v512 = vld [vmem:[%s1 + $0x8c] sm:$0xf]
      %v513 = vld [vmem:[%s1 + $0x90] sm:$0xf]
      %v514 = vld [vmem:[%s1 + $0x94] sm:$0xf]
      %v515 = vld [vmem:[%s1 + $0x98] sm:$0xf]
      %v516 = vld [vmem:[%s1 + $0x9c] sm:$0xf]
      %v517 = vld [vmem:[%s1 + $0xa0] sm:$0xf]
      %v518 = vld [vmem:[%s1 + $0xa4] sm:$0xf]
      %v519 = vld [vmem:[%s1 + $0xa8] sm:$0xf]
      %v520 = vld [vmem:[%s1 + $0xac] sm:$0xf]
      %v521 = vld [vmem:[%s1 + $0xb0] sm:$0xf]
      %v522 = vld [vmem:[%s1 + $0xb4] sm:$0xf]
      %v523 = vld [vmem:[%s1 + $0xb8] sm:$0xf]
      %v524 = vld [vmem:[%s1 + $0xbc] sm:$0xf]
      %v525 = vld [vmem:[%s1 + $0xc0] sm:$0xf]
      %v526 = vld [vmem:[%s1 + $0xc4] sm:$0xf]
      %v527 = vld [vmem:[%s1 + $0xc8] sm:$0xf]
      %v528 = vld [vmem:[%s1 + $0xcc] sm:$0xf]
      %v529 = vld [vmem:[%s1 + $0xd0] sm:$0xf]
      %v530 = vld [vmem:[%s1 + $0xd4] sm:$0xf]
      %v531 = vld [vmem:[%s1 + $0xd8] sm:$0xf]
      %v532 = vld [vmem:[%s1 + $0xdc] sm:$0xf]
      %v533 = vld [vmem:[%s1 + $0xe0] sm:$0xf]
      %v534 = vld [vmem:[%s1 + $0xe4] sm:$0xf]
      %v535 = vld [vmem:[%s1 + $0xe8] sm:$0xf]
      %v536 = vld [vmem:[%s1 + $0xec] sm:$0xf]
      %v537 = vld [vmem:[%s1 + $0xf0] sm:$0xf]
      %v538 = vld [vmem:[%s1 + $0xf4] sm:$0xf]
      %v539 = vld [vmem:[%s1 + $0xf8] sm:$0xf]
      %v540 = vld [vmem:[%s1 + $0xfc] sm:$0xf]
      %v573 = vunpack.c.l.b16 %v509
      %v574 = vunpack.c.l.b16 %v510
      %v575 = vunpack.c.l.b16 %v511
      %v576 = vunpack.c.l.b16 %v512
      %v577 = vunpack.c.l.b16 %v513
      %v578 = vunpack.c.l.b16 %v514
      %v579 = vunpack.c.l.b16 %v515
      %v580 = vunpack.c.l.b16 %v516
      %v581 = vunpack.c.l.b16 %v517
      %v582 = vunpack.c.l.b16 %v518
      %v583 = vunpack.c.l.b16 %v519
      %v584 = vunpack.c.l.b16 %v520
      %v585 = vunpack.c.l.b16 %v521
      %v586 = vunpack.c.l.b16 %v522
      %v587 = vunpack.c.l.b16 %v523
      %v588 = vunpack.c.l.b16 %v524
      %v589 = vunpack.c.l.b16 %v525
      %v590 = vunpack.c.l.b16 %v526
      %v591 = vunpack.c.l.b16 %v527
      %v592 = vunpack.c.l.b16 %v528
      %v593 = vunpack.c.l.b16 %v529
      %v594 = vunpack.c.l.b16 %v530
      %v595 = vunpack.c.l.b16 %v531
      %v596 = vunpack.c.l.b16 %v532
      %v597 = vunpack.c.l.b16 %v533
      %v598 = vunpack.c.l.b16 %v534
      %v599 = vunpack.c.l.b16 %v535
      %v600 = vunpack.c.l.b16 %v536
      %v601 = vunpack.c.l.b16 %v537
      %v602 = vunpack.c.l.b16 %v538
      %v603 = vunpack.c.l.b16 %v539
      %v604 = vunpack.c.l.b16 %v540
      %v605 = vpack.c.b16 %v574, %v573
      %v606 = vpack.c.b16 %v576, %v575
      %v607 = vpack.c.b16 %v578, %v577
      %v608 = vpack.c.b16 %v580, %v579
      %v609 = vpack.c.b16 %v582, %v581
      %v610 = vpack.c.b16 %v584, %v583
      %v611 = vpack.c.b16 %v586, %v585
      %v612 = vpack.c.b16 %v588, %v587
      %v613 = vpack.c.b16 %v590, %v589
      %v614 = vpack.c.b16 %v592, %v591
      %v615 = vpack.c.b16 %v594, %v593
      %v616 = vpack.c.b16 %v596, %v595
      %v617 = vpack.c.b16 %v598, %v597
      %v618 = vpack.c.b16 %v600, %v599
      %v619 = vpack.c.b16 %v602, %v601
      %v620 = vpack.c.b16 %v604, %v603
      %637 = vmatprep.subr.bf16.mxu0 0
      %638 = vmatpush1.bf16.msra.mxu0 %v605
      %639 = vmatprep.subr.bf16.mxu0 0
      %640 = vmatpush1.bf16.msra.mxu0 %v606
      %641 = vmatprep.subr.bf16.mxu0 0
      %642 = vmatpush1.bf16.msra.mxu0 %v607
      %643 = vmatprep.subr.bf16.mxu0 0
      %644 = vmatpush1.bf16.msra.mxu0 %v608
      %645 = vmatprep.subr.bf16.mxu0 0
      %646 = vmatpush1.bf16.msra.mxu0 %v609
      %647 = vmatprep.subr.bf16.mxu0 0
      %648 = vmatpush1.bf16.msra.mxu0 %v610
      %649 = vmatprep.subr.bf16.mxu0 0
      %650 = vmatpush1.bf16.msra.mxu0 %v611
      %651 = vmatprep.subr.bf16.mxu0 0
      %652 = vmatpush1.bf16.msra.mxu0 %v612
      %653 = vmatprep.subr.bf16.mxu0 0
      %654 = vmatpush1.bf16.msra.mxu0 %v613
      %655 = vmatprep.subr.bf16.mxu0 0
      %656 = vmatpush1.bf16.msra.mxu0 %v614
      %657 = vmatprep.subr.bf16.mxu0 0
      %658 = vmatpush1.bf16.msra.mxu0 %v615
      %659 = vmatprep.subr.bf16.mxu0 0
      %660 = vmatpush1.bf16.msra.mxu0 %v616
      %661 = vmatprep.subr.bf16.mxu0 0
      %662 = vmatpush1.bf16.msra.mxu0 %v617
      %663 = vmatprep.subr.bf16.mxu0 0
      %664 = vmatpush1.bf16.msra.mxu0 %v618
      %665 = vmatprep.subr.bf16.mxu0 0
      %666 = vmatpush1.bf16.msra.mxu0 %v619
      %667 = vmatprep.subr.bf16.mxu0 0
      %668 = vmatpush1.bf16.msra.mxu0 %v620
      %669 = vmatprep.mubr.bf16.mxu0 %v505
      %670 = vmatmul.mubr.bf16.gmra.mrb[0].mxu0 %v493
      %v671 = vpop.f32.mrb[0].mxu0
      %v672 = vadd.f32 0.0, %v671
      %v673 = vpop.f32.mrb[0].mxu0
      %v674 = vpop.f32.mrb[0].mxu0
      %v675 = vadd.f32 0.0, %v674
      %v676 = vpop.f32.mrb[0].mxu0
      %677 = vmatprep.mubr.bf16.mxu0 %v506
      %678 = vmatmul.mubr.bf16.gmra.mrb[0].mxu0 %v494
      %v679 = vpop.f32.mrb[0].mxu0
      %v680 = vadd.f32 0.0, %v679
      %v681 = vpop.f32.mrb[0].mxu0
      %v682 = vpop.f32.mrb[0].mxu0
      %v683 = vadd.f32 0.0, %v682
      %v684 = vpop.f32.mrb[0].mxu0
      %685 = vdwg.mxu0
      %v718 = vunpack.c.l.b16 %v387
      %v719 = vunpack.c.l.b16 %v388
      %v720 = vunpack.c.l.b16 %v389
      %v721 = vunpack.c.l.b16 %v390
      %v722 = vunpack.c.l.b16 %v391
      %v723 = vunpack.c.l.b16 %v392
      %v724 = vunpack.c.l.b16 %v393
      %v725 = vunpack.c.l.b16 %v394
      %v726 = vunpack.c.l.b16 %v395
      %v727 = vunpack.c.l.b16 %v396
      %v728 = vunpack.c.l.b16 %v397
      %v729 = vunpack.c.l.b16 %v398
      %v730 = vunpack.c.l.b16 %v399
      %v731 = vunpack.c.l.b16 %v400
      %v732 = vunpack.c.l.b16 %v401
      %v733 = vunpack.c.l.b16 %v402
      %v734 = vunpack.c.l.b16 %v403
      %v735 = vunpack.c.l.b16 %v404
      %v736 = vunpack.c.l.b16 %v405
      %v737 = vunpack.c.l.b16 %v406
      %v738 = vunpack.c.l.b16 %v407
      %v739 = vunpack.c.l.b16 %v408
      %v740 = vunpack.c.l.b16 %v409
      %v741 = vunpack.c.l.b16 %v410
      %v742 = vunpack.c.l.b16 %v411
      %v743 = vunpack.c.l.b16 %v412
      %v744 = vunpack.c.l.b16 %v413
      %v745 = vunpack.c.l.b16 %v414
      %v746 = vunpack.c.l.b16 %v415
      %v747 = vunpack.c.l.b16 %v416
      %v748 = vunpack.c.l.b16 %v417
      %v749 = vunpack.c.l.b16 %v418
      %v750 = vpack.c.b16 %v719, %v718
      %v751 = vpack.c.b16 %v721, %v720
      %v752 = vpack.c.b16 %v723, %v722
      %v753 = vpack.c.b16 %v725, %v724
      %v754 = vpack.c.b16 %v727, %v726
      %v755 = vpack.c.b16 %v729, %v728
      %v756 = vpack.c.b16 %v731, %v730
      %v757 = vpack.c.b16 %v733, %v732
      %v758 = vpack.c.b16 %v735, %v734
      %v759 = vpack.c.b16 %v737, %v736
      %v760 = vpack.c.b16 %v739, %v738
      %v761 = vpack.c.b16 %v741, %v740
      %v762 = vpack.c.b16 %v743, %v742
      %v763 = vpack.c.b16 %v745, %v744
      %v764 = vpack.c.b16 %v747, %v746
      %v765 = vpack.c.b16 %v749, %v748
      %782 = vmatprep.subr.bf16.mxu0 0
      %783 = vmatpush1.bf16.msra.mxu0 %v750
      %784 = vmatprep.subr.bf16.mxu0 0
      %785 = vmatpush1.bf16.msra.mxu0 %v751
      %786 = vmatprep.subr.bf16.mxu0 0
      %787 = vmatpush1.bf16.msra.mxu0 %v752
      %788 = vmatprep.subr.bf16.mxu0 0
      %789 = vmatpush1.bf16.msra.mxu0 %v753
      %790 = vmatprep.subr.bf16.mxu0 0
      %791 = vmatpush1.bf16.msra.mxu0 %v754
      %792 = vmatprep.subr.bf16.mxu0 0
      %793 = vmatpush1.bf16.msra.mxu0 %v755
      %794 = vmatprep.subr.bf16.mxu0 0
      %795 = vmatpush1.bf16.msra.mxu0 %v756
      %796 = vmatprep.subr.bf16.mxu0 0
      %797 = vmatpush1.bf16.msra.mxu0 %v757
      %798 = vmatprep.subr.bf16.mxu0 0
      %799 = vmatpush1.bf16.msra.mxu0 %v758
      %800 = vmatprep.subr.bf16.mxu0 0
      %801 = vmatpush1.bf16.msra.mxu0 %v759
      %802 = vmatprep.subr.bf16.mxu0 0
      %803 = vmatpush1.bf16.msra.mxu0 %v760
      %804 = vmatprep.subr.bf16.mxu0 0
      %805 = vmatpush1.bf16.msra.mxu0 %v761
      %806 = vmatprep.subr.bf16.mxu0 0
      %807 = vmatpush1.bf16.msra.mxu0 %v762
      %808 = vmatprep.subr.bf16.mxu0 0
      %809 = vmatpush1.bf16.msra.mxu0 %v763
      %810 = vmatprep.subr.bf16.mxu0 0
      %811 = vmatpush1.bf16.msra.mxu0 %v764
      %812 = vmatprep.subr.bf16.mxu0 0
      %813 = vmatpush1.bf16.msra.mxu0 %v765
      %814 = vmatprep.mubr.bf16.mxu0 %v383
      %815 = vmatmul.mubr.bf16.gmra.mrb[0].mxu0 %v371
      %v816 = vpop.f32.mrb[0].mxu0
      %v817 = vadd.f32 %v672, %v816
      %v818 = vpop.f32.mrb[0].mxu0
      %v819 = vpop.f32.mrb[0].mxu0
      %v820 = vadd.f32 %v675, %v819
      %v821 = vpop.f32.mrb[0].mxu0
      %822 = vmatprep.mubr.bf16.mxu0 %v384
      %823 = vmatmul.mubr.bf16.gmra.mrb[0].mxu0 %v372
      %v824 = vpop.f32.mrb[0].mxu0
      %v825 = vadd.f32 %v680, %v824
      %v826 = vpop.f32.mrb[0].mxu0
      %v827 = vpop.f32.mrb[0].mxu0
      %v828 = vadd.f32 %v683, %v827
      %v829 = vpop.f32.mrb[0].mxu0
      %830 = vdwg.mxu0
      %s831 = sadd.s32 %s345, 54
      %s832 = smul.addr %s831, 4
      %s833 = scalar_lea.vmem %s321, %s832
      %v834 = vld [vmem:[%s833] sm:$0xf]
      %v835 = vld [vmem:[%s833 + $0x8] sm:$0xf]
      %v836 = vld [vmem:[%s833 + $0x10] sm:$0xf]
      %v837 = vld [vmem:[%s833 + $0x18] sm:$0xf]
      %v839 = vshrl.u32 %v481, 16
      %v841 = vrot.slane %v839, 4
      %v842 = vshll.u32 %v481, 16
      %v844 = vrot.slane %v842, 5
      %v845 = vor.u32 %v841, %v844
      %v846 = vrot.slane %v845, 4
      %v848 = vshll.u32 %v482, 16
      %v850 = vrot.slane %v848, 5
      %v851 = vsel %vm421, %v846, %v850
      %v853 = vshrl.u32 %v483, 16
      %v855 = vrot.slane %v853, 4
      %v856 = vshll.u32 %v483, 16
      %v858 = vrot.slane %v856, 5
      %v859 = vor.u32 %v855, %v858
      %v860 = vrot.slane %v859, 4
      %v862 = vshll.u32 %v484, 16
      %v864 = vrot.slane %v862, 5
      %v865 = vsel %vm421, %v860, %v864
      %v867 = vshrl.u32 %v485, 16
      %v869 = vrot.slane %v867, 4
      %v870 = vshll.u32 %v485, 16
      %v872 = vrot.slane %v870, 5
      %v873 = vor.u32 %v869, %v872
      %v874 = vrot.slane %v873, 4
      %v876 = vshll.u32 %v486, 16
      %v878 = vrot.slane %v876, 5
      %v879 = vsel %vm421, %v874, %v878
      %v881 = vshrl.u32 %v487, 16
      %v883 = vrot.slane %v881, 4
      %v884 = vshll.u32 %v487, 16
      %v886 = vrot.slane %v884, 5
      %v887 = vor.u32 %v883, %v886
      %v888 = vrot.slane %v887, 4
      %v890 = vshll.u32 %v488, 16
      %v892 = vrot.slane %v890, 5
      %v893 = vsel %vm421, %v888, %v892
      %v898 = vunpack.c.l.b16 %v834
      %v899 = vunpack.c.l.b16 %v835
      %v900 = vunpack.c.l.b16 %v836
      %v901 = vunpack.c.l.b16 %v837
      %v902 = vpack.c.b16 %v899, %v898
      %v903 = vpack.c.b16 %v901, %v900
      %v906 = vunpack.c.l.b16 %v851
      %v907 = vunpack.c.l.b16 %v865
      %v908 = vunpack.c.l.b16 %v879
      %v909 = vunpack.c.l.b16 %v893
      %v910 = vpack.c.b16 %v907, %v906
      %v911 = vpack.c.b16 %v909, %v908
      %v914 = vld [vmem:[%s1 + $0x100] sm:$0xf]
      %v915 = vld [vmem:[%s1 + $0x104] sm:$0xf]
      %v916 = vld [vmem:[%s1 + $0x108] sm:$0xf]
      %v917 = vld [vmem:[%s1 + $0x10c] sm:$0xf]
      %v918 = vld [vmem:[%s1 + $0x110] sm:$0xf]
      %v919 = vld [vmem:[%s1 + $0x114] sm:$0xf]
      %v920 = vld [vmem:[%s1 + $0x118] sm:$0xf]
      %v921 = vld [vmem:[%s1 + $0x11c] sm:$0xf]
      %v922 = vld [vmem:[%s1 + $0x120] sm:$0xf]
      %v923 = vld [vmem:[%s1 + $0x124] sm:$0xf]
      %v924 = vld [vmem:[%s1 + $0x128] sm:$0xf]
      %v925 = vld [vmem:[%s1 + $0x12c] sm:$0xf]
      %v926 = vld [vmem:[%s1 + $0x130] sm:$0xf]
      %v927 = vld [vmem:[%s1 + $0x134] sm:$0xf]
      %v928 = vld [vmem:[%s1 + $0x138] sm:$0xf]
      %v929 = vld [vmem:[%s1 + $0x13c] sm:$0xf]
      %v930 = vld [vmem:[%s1 + $0x140] sm:$0xf]
      %v931 = vld [vmem:[%s1 + $0x144] sm:$0xf]
      %v932 = vld [vmem:[%s1 + $0x148] sm:$0xf]
      %v933 = vld [vmem:[%s1 + $0x14c] sm:$0xf]
      %v934 = vld [vmem:[%s1 + $0x150] sm:$0xf]
      %v935 = vld [vmem:[%s1 + $0x154] sm:$0xf]
      %v936 = vld [vmem:[%s1 + $0x158] sm:$0xf]
      %v937 = vld [vmem:[%s1 + $0x15c] sm:$0xf]
      %v938 = vld [vmem:[%s1 + $0x160] sm:$0xf]
      %v939 = vld [vmem:[%s1 + $0x164] sm:$0xf]
      %v940 = vld [vmem:[%s1 + $0x168] sm:$0xf]
      %v941 = vld [vmem:[%s1 + $0x16c] sm:$0xf]
      %v942 = vld [vmem:[%s1 + $0x170] sm:$0xf]
      %v943 = vld [vmem:[%s1 + $0x174] sm:$0xf]
      %v944 = vld [vmem:[%s1 + $0x178] sm:$0xf]
      %v945 = vld [vmem:[%s1 + $0x17c] sm:$0xf]
      %v978 = vunpack.c.l.b16 %v914
      %v979 = vunpack.c.l.b16 %v915
      %v980 = vunpack.c.l.b16 %v916
      %v981 = vunpack.c.l.b16 %v917
      %v982 = vunpack.c.l.b16 %v918
      %v983 = vunpack.c.l.b16 %v919
      %v984 = vunpack.c.l.b16 %v920
      %v985 = vunpack.c.l.b16 %v921
      %v986 = vunpack.c.l.b16 %v922
      %v987 = vunpack.c.l.b16 %v923
      %v988 = vunpack.c.l.b16 %v924
      %v989 = vunpack.c.l.b16 %v925
      %v990 = vunpack.c.l.b16 %v926
      %v991 = vunpack.c.l.b16 %v927
      %v992 = vunpack.c.l.b16 %v928
      %v993 = vunpack.c.l.b16 %v929
      %v994 = vunpack.c.l.b16 %v930
      %v995 = vunpack.c.l.b16 %v931
      %v996 = vunpack.c.l.b16 %v932
      %v997 = vunpack.c.l.b16 %v933
      %v998 = vunpack.c.l.b16 %v934
      %v999 = vunpack.c.l.b16 %v935
      %v1000 = vunpack.c.l.b16 %v936
      %v1001 = vunpack.c.l.b16 %v937
      %v1002 = vunpack.c.l.b16 %v938
      %v1003 = vunpack.c.l.b16 %v939
      %v1004 = vunpack.c.l.b16 %v940
      %v1005 = vunpack.c.l.b16 %v941
      %v1006 = vunpack.c.l.b16 %v942
      %v1007 = vunpack.c.l.b16 %v943
      %v1008 = vunpack.c.l.b16 %v944
      %v1009 = vunpack.c.l.b16 %v945
      %v1010 = vpack.c.b16 %v979, %v978
      %v1011 = vpack.c.b16 %v981, %v980
      %v1012 = vpack.c.b16 %v983, %v982
      %v1013 = vpack.c.b16 %v985, %v984
      %v1014 = vpack.c.b16 %v987, %v986
      %v1015 = vpack.c.b16 %v989, %v988
      %v1016 = vpack.c.b16 %v991, %v990
      %v1017 = vpack.c.b16 %v993, %v992
      %v1018 = vpack.c.b16 %v995, %v994
      %v1019 = vpack.c.b16 %v997, %v996
      %v1020 = vpack.c.b16 %v999, %v998
      %v1021 = vpack.c.b16 %v1001, %v1000
      %v1022 = vpack.c.b16 %v1003, %v1002
      %v1023 = vpack.c.b16 %v1005, %v1004
      %v1024 = vpack.c.b16 %v1007, %v1006
      %v1025 = vpack.c.b16 %v1009, %v1008
      %1042 = vmatprep.subr.bf16.mxu0 0
      %1043 = vmatpush1.bf16.msra.mxu0 %v1010
      %1044 = vmatprep.subr.bf16.mxu0 0
      %1045 = vmatpush1.bf16.msra.mxu0 %v1011
      %1046 = vmatprep.subr.bf16.mxu0 0
      %1047 = vmatpush1.bf16.msra.mxu0 %v1012
      %1048 = vmatprep.subr.bf16.mxu0 0
      %1049 = vmatpush1.bf16.msra.mxu0 %v1013
      %1050 = vmatprep.subr.bf16.mxu0 0
      %1051 = vmatpush1.bf16.msra.mxu0 %v1014
      %1052 = vmatprep.subr.bf16.mxu0 0
      %1053 = vmatpush1.bf16.msra.mxu0 %v1015
      %1054 = vmatprep.subr.bf16.mxu0 0
      %1055 = vmatpush1.bf16.msra.mxu0 %v1016
      %1056 = vmatprep.subr.bf16.mxu0 0
      %1057 = vmatpush1.bf16.msra.mxu0 %v1017
      %1058 = vmatprep.subr.bf16.mxu0 0
      %1059 = vmatpush1.bf16.msra.mxu0 %v1018
      %1060 = vmatprep.subr.bf16.mxu0 0
      %1061 = vmatpush1.bf16.msra.mxu0 %v1019
      %1062 = vmatprep.subr.bf16.mxu0 0
      %1063 = vmatpush1.bf16.msra.mxu0 %v1020
      %1064 = vmatprep.subr.bf16.mxu0 0
      %1065 = vmatpush1.bf16.msra.mxu0 %v1021
      %1066 = vmatprep.subr.bf16.mxu0 0
      %1067 = vmatpush1.bf16.msra.mxu0 %v1022
      %1068 = vmatprep.subr.bf16.mxu0 0
      %1069 = vmatpush1.bf16.msra.mxu0 %v1023
      %1070 = vmatprep.subr.bf16.mxu0 0
      %1071 = vmatpush1.bf16.msra.mxu0 %v1024
      %1072 = vmatprep.subr.bf16.mxu0 0
      %1073 = vmatpush1.bf16.msra.mxu0 %v1025
      %1074 = vmatprep.mubr.bf16.mxu0 %v910
      %1075 = vmatmul.mubr.bf16.gmra.mrb[0].mxu0 %v902
      %v1076 = vpop.f32.mrb[0].mxu0
      %v1077 = vadd.f32 0.0, %v1076
      %v1078 = vpop.f32.mrb[0].mxu0
      %v1079 = vpop.f32.mrb[0].mxu0
      %v1080 = vadd.f32 0.0, %v1079
      %v1081 = vpop.f32.mrb[0].mxu0
      %1082 = vmatprep.mubr.bf16.mxu0 %v911
      %1083 = vmatmul.mubr.bf16.gmra.mrb[0].mxu0 %v903
      %v1084 = vpop.f32.mrb[0].mxu0
      %v1085 = vadd.f32 0.0, %v1084
      %v1086 = vpop.f32.mrb[0].mxu0
      %v1087 = vpop.f32.mrb[0].mxu0
      %v1088 = vadd.f32 0.0, %v1087
      %v1089 = vpop.f32.mrb[0].mxu0
      %1090 = vdwg.mxu0
      %v1091 = vadd.f32 %v817, %v1077
      %v1092 = vadd.f32 %v820, %v1080
      %v1093 = vadd.f32 %v825, %v1085
      %v1094 = vadd.f32 %v828, %v1088
      %s1095 = sadd.s32 %s344, 1
      %s1096 = smul.u32 %s1095, 2
      %s1097 = smul.addr %s1096, 4
      %s1098 = scalar_lea.vmem %s321, %s1097
      %v1099 = vld [vmem:[%s1098] sm:$0xf]
      %v1100 = vld [vmem:[%s1098 + $0x4] sm:$0x1]
      %v1101 = vld [vmem:[%s1098 + $0x8] sm:$0xf]
      %v1102 = vld [vmem:[%s1098 + $0xc] sm:$0x1]
      %v1103 = vld [vmem:[%s1098 + $0x10] sm:$0xf]
      %v1104 = vld [vmem:[%s1098 + $0x14] sm:$0x1]
      %v1105 = vld [vmem:[%s1098 + $0x18] sm:$0xf]
      %v1106 = vld [vmem:[%s1098 + $0x1c] sm:$0x1]
      %s1107 = sadd.s32 %s1096, 18
      %s1108 = smul.addr %s1107, 4
      %s1109 = scalar_lea.vmem %s321, %s1108
      %v1110 = vld [vmem:[%s1109] sm:$0xf]
      %v1111 = vld [vmem:[%s1109 + $0x8] sm:$0xf]
      %v1112 = vld [vmem:[%s1109 + $0x10] sm:$0xf]
      %v1113 = vld [vmem:[%s1109 + $0x18] sm:$0xf]
      %v1118 = vunpack.c.l.b16 %v1099
      %v1119 = vunpack.c.l.b16 %v1101
      %v1120 = vunpack.c.l.b16 %v1103
      %v1121 = vunpack.c.l.b16 %v1105
      %v1122 = vpack.c.b16 %v1119, %v1118
      %v1123 = vpack.c.b16 %v1121, %v1120
      %v1130 = vunpack.c.l.b16 %v1110
      %v1131 = vunpack.c.l.b16 %v1111
      %v1132 = vunpack.c.l.b16 %v1112
      %v1133 = vunpack.c.l.b16 %v1113
      %v1134 = vpack.c.b16 %v1131, %v1130
      %v1135 = vpack.c.b16 %v1133, %v1132
      %v1138 = vld [vmem:[%s1 + $0x180] sm:$0xf]
      %v1139 = vld [vmem:[%s1 + $0x184] sm:$0xf]
      %v1140 = vld [vmem:[%s1 + $0x188] sm:$0xf]
      %v1141 = vld [vmem:[%s1 + $0x18c] sm:$0xf]
      %v1142 = vld [vmem:[%s1 + $0x190] sm:$0xf]
      %v1143 = vld [vmem:[%s1 + $0x194] sm:$0xf]
      %v1144 = vld [vmem:[%s1 + $0x198] sm:$0xf]
      %v1145 = vld [vmem:[%s1 + $0x19c] sm:$0xf]
      %v1146 = vld [vmem:[%s1 + $0x1a0] sm:$0xf]
      %v1147 = vld [vmem:[%s1 + $0x1a4] sm:$0xf]
      %v1148 = vld [vmem:[%s1 + $0x1a8] sm:$0xf]
      %v1149 = vld [vmem:[%s1 + $0x1ac] sm:$0xf]
      %v1150 = vld [vmem:[%s1 + $0x1b0] sm:$0xf]
      %v1151 = vld [vmem:[%s1 + $0x1b4] sm:$0xf]
      %v1152 = vld [vmem:[%s1 + $0x1b8] sm:$0xf]
      %v1153 = vld [vmem:[%s1 + $0x1bc] sm:$0xf]
      %v1154 = vld [vmem:[%s1 + $0x1c0] sm:$0xf]
      %v1155 = vld [vmem:[%s1 + $0x1c4] sm:$0xf]
      %v1156 = vld [vmem:[%s1 + $0x1c8] sm:$0xf]
      %v1157 = vld [vmem:[%s1 + $0x1cc] sm:$0xf]
      %v1158 = vld [vmem:[%s1 + $0x1d0] sm:$0xf]
      %v1159 = vld [vmem:[%s1 + $0x1d4] sm:$0xf]
      %v1160 = vld [vmem:[%s1 + $0x1d8] sm:$0xf]
      %v1161 = vld [vmem:[%s1 + $0x1dc] sm:$0xf]
      %v1162 = vld [vmem:[%s1 + $0x1e0] sm:$0xf]
      %v1163 = vld [vmem:[%s1 + $0x1e4] sm:$0xf]
      %v1164 = vld [vmem:[%s1 + $0x1e8] sm:$0xf]
      %v1165 = vld [vmem:[%s1 + $0x1ec] sm:$0xf]
      %v1166 = vld [vmem:[%s1 + $0x1f0] sm:$0xf]
      %v1167 = vld [vmem:[%s1 + $0x1f4] sm:$0xf]
      %v1168 = vld [vmem:[%s1 + $0x1f8] sm:$0xf]
      %v1169 = vld [vmem:[%s1 + $0x1fc] sm:$0xf]
      %v1202 = vunpack.c.l.b16 %v1138
      %v1203 = vunpack.c.l.b16 %v1139
      %v1204 = vunpack.c.l.b16 %v1140
      %v1205 = vunpack.c.l.b16 %v1141
      %v1206 = vunpack.c.l.b16 %v1142
      %v1207 = vunpack.c.l.b16 %v1143
      %v1208 = vunpack.c.l.b16 %v1144
      %v1209 = vunpack.c.l.b16 %v1145
      %v1210 = vunpack.c.l.b16 %v1146
      %v1211 = vunpack.c.l.b16 %v1147
      %v1212 = vunpack.c.l.b16 %v1148
      %v1213 = vunpack.c.l.b16 %v1149
      %v1214 = vunpack.c.l.b16 %v1150
      %v1215 = vunpack.c.l.b16 %v1151
      %v1216 = vunpack.c.l.b16 %v1152
      %v1217 = vunpack.c.l.b16 %v1153
      %v1218 = vunpack.c.l.b16 %v1154
      %v1219 = vunpack.c.l.b16 %v1155
      %v1220 = vunpack.c.l.b16 %v1156
      %v1221 = vunpack.c.l.b16 %v1157
      %v1222 = vunpack.c.l.b16 %v1158
      %v1223 = vunpack.c.l.b16 %v1159
      %v1224 = vunpack.c.l.b16 %v1160
      %v1225 = vunpack.c.l.b16 %v1161
      %v1226 = vunpack.c.l.b16 %v1162
      %v1227 = vunpack.c.l.b16 %v1163
      %v1228 = vunpack.c.l.b16 %v1164
      %v1229 = vunpack.c.l.b16 %v1165
      %v1230 = vunpack.c.l.b16 %v1166
      %v1231 = vunpack.c.l.b16 %v1167
      %v1232 = vunpack.c.l.b16 %v1168
      %v1233 = vunpack.c.l.b16 %v1169
      %v1234 = vpack.c.b16 %v1203, %v1202
      %v1235 = vpack.c.b16 %v1205, %v1204
      %v1236 = vpack.c.b16 %v1207, %v1206
      %v1237 = vpack.c.b16 %v1209, %v1208
      %v1238 = vpack.c.b16 %v1211, %v1210
      %v1239 = vpack.c.b16 %v1213, %v1212
      %v1240 = vpack.c.b16 %v1215, %v1214
      %v1241 = vpack.c.b16 %v1217, %v1216
      %v1242 = vpack.c.b16 %v1219, %v1218
      %v1243 = vpack.c.b16 %v1221, %v1220
      %v1244 = vpack.c.b16 %v1223, %v1222
      %v1245 = vpack.c.b16 %v1225, %v1224
      %v1246 = vpack.c.b16 %v1227, %v1226
      %v1247 = vpack.c.b16 %v1229, %v1228
      %v1248 = vpack.c.b16 %v1231, %v1230
      %v1249 = vpack.c.b16 %v1233, %v1232
      %1266 = vmatprep.subr.bf16.mxu0 0
      %1267 = vmatpush1.bf16.msra.mxu0 %v1234
      %1268 = vmatprep.subr.bf16.mxu0 0
      %1269 = vmatpush1.bf16.msra.mxu0 %v1235
      %1270 = vmatprep.subr.bf16.mxu0 0
      %1271 = vmatpush1.bf16.msra.mxu0 %v1236
      %1272 = vmatprep.subr.bf16.mxu0 0
      %1273 = vmatpush1.bf16.msra.mxu0 %v1237
      %1274 = vmatprep.subr.bf16.mxu0 0
      %1275 = vmatpush1.bf16.msra.mxu0 %v1238
      %1276 = vmatprep.subr.bf16.mxu0 0
      %1277 = vmatpush1.bf16.msra.mxu0 %v1239
      %1278 = vmatprep.subr.bf16.mxu0 0
      %1279 = vmatpush1.bf16.msra.mxu0 %v1240
      %1280 = vmatprep.subr.bf16.mxu0 0
      %1281 = vmatpush1.bf16.msra.mxu0 %v1241
      %1282 = vmatprep.subr.bf16.mxu0 0
      %1283 = vmatpush1.bf16.msra.mxu0 %v1242
      %1284 = vmatprep.subr.bf16.mxu0 0
      %1285 = vmatpush1.bf16.msra.mxu0 %v1243
      %1286 = vmatprep.subr.bf16.mxu0 0
      %1287 = vmatpush1.bf16.msra.mxu0 %v1244
      %1288 = vmatprep.subr.bf16.mxu0 0
      %1289 = vmatpush1.bf16.msra.mxu0 %v1245
      %1290 = vmatprep.subr.bf16.mxu0 0
      %1291 = vmatpush1.bf16.msra.mxu0 %v1246
      %1292 = vmatprep.subr.bf16.mxu0 0
      %1293 = vmatpush1.bf16.msra.mxu0 %v1247
      %1294 = vmatprep.subr.bf16.mxu0 0
      %1295 = vmatpush1.bf16.msra.mxu0 %v1248
      %1296 = vmatprep.subr.bf16.mxu0 0
      %1297 = vmatpush1.bf16.msra.mxu0 %v1249
      %1298 = vmatprep.mubr.bf16.mxu0 %v1134
      %1299 = vmatmul.mubr.bf16.gmra.mrb[0].mxu0 %v1122
      %v1300 = vpop.f32.mrb[0].mxu0
      %v1301 = vadd.f32 0.0, %v1300
      %v1302 = vpop.f32.mrb[0].mxu0
      %v1303 = vpop.f32.mrb[0].mxu0
      %v1304 = vadd.f32 0.0, %v1303
      %v1305 = vpop.f32.mrb[0].mxu0
      %1306 = vmatprep.mubr.bf16.mxu0 %v1135
      %1307 = vmatmul.mubr.bf16.gmra.mrb[0].mxu0 %v1123
      %v1308 = vpop.f32.mrb[0].mxu0
      %v1309 = vadd.f32 0.0, %v1308
      %v1310 = vpop.f32.mrb[0].mxu0
      %v1311 = vpop.f32.mrb[0].mxu0
      %v1312 = vadd.f32 0.0, %v1311
      %v1313 = vpop.f32.mrb[0].mxu0
      %1314 = vdwg.mxu0
      %v1315 = vadd.f32 %v1091, %v1301
      %v1316 = vadd.f32 %v1092, %v1304
      %v1317 = vadd.f32 %v1093, %v1309
      %v1318 = vadd.f32 %v1094, %v1312
      %v1320 = vshrl.u32 %v1099, 16
      %v1322 = vrot.slane %v1320, 4
      %v1323 = vshll.u32 %v1099, 16
      %v1325 = vrot.slane %v1323, 5
      %v1326 = vor.u32 %v1322, %v1325
      %v1327 = vrot.slane %v1326, 4
      %v1329 = vshll.u32 %v1100, 16
      %v1331 = vrot.slane %v1329, 5
      %v1332 = vsel %vm421, %v1327, %v1331
      %v1334 = vshrl.u32 %v1101, 16
      %v1336 = vrot.slane %v1334, 4
      %v1337 = vshll.u32 %v1101, 16
      %v1339 = vrot.slane %v1337, 5
      %v1340 = vor.u32 %v1336, %v1339
      %v1341 = vrot.slane %v1340, 4
      %v1343 = vshll.u32 %v1102, 16
      %v1345 = vrot.slane %v1343, 5
      %v1346 = vsel %vm421, %v1341, %v1345
      %v1348 = vshrl.u32 %v1103, 16
      %v1350 = vrot.slane %v1348, 4
      %v1351 = vshll.u32 %v1103, 16
      %v1353 = vrot.slane %v1351, 5
      %v1354 = vor.u32 %v1350, %v1353
      %v1355 = vrot.slane %v1354, 4
      %v1357 = vshll.u32 %v1104, 16
      %v1359 = vrot.slane %v1357, 5
      %v1360 = vsel %vm421, %v1355, %v1359
      %v1362 = vshrl.u32 %v1105, 16
      %v1364 = vrot.slane %v1362, 4
      %v1365 = vshll.u32 %v1105, 16
      %v1367 = vrot.slane %v1365, 5
      %v1368 = vor.u32 %v1364, %v1367
      %v1369 = vrot.slane %v1368, 4
      %v1371 = vshll.u32 %v1106, 16
      %v1373 = vrot.slane %v1371, 5
      %v1374 = vsel %vm421, %v1369, %v1373
      %v1375 = vld [vmem:[%s1 + $0x200] sm:$0xf]
      %v1376 = vld [vmem:[%s1 + $0x204] sm:$0xf]
      %v1377 = vld [vmem:[%s1 + $0x208] sm:$0xf]
      %v1378 = vld [vmem:[%s1 + $0x20c] sm:$0xf]
      %v1379 = vld [vmem:[%s1 + $0x210] sm:$0xf]
      %v1380 = vld [vmem:[%s1 + $0x214] sm:$0xf]
      %v1381 = vld [vmem:[%s1 + $0x218] sm:$0xf]
      %v1382 = vld [vmem:[%s1 + $0x21c] sm:$0xf]
      %v1383 = vld [vmem:[%s1 + $0x220] sm:$0xf]
      %v1384 = vld [vmem:[%s1 + $0x224] sm:$0xf]
      %v1385 = vld [vmem:[%s1 + $0x228] sm:$0xf]
      %v1386 = vld [vmem:[%s1 + $0x22c] sm:$0xf]
      %v1387 = vld [vmem:[%s1 + $0x230] sm:$0xf]
      %v1388 = vld [vmem:[%s1 + $0x234] sm:$0xf]
      %v1389 = vld [vmem:[%s1 + $0x238] sm:$0xf]
      %v1390 = vld [vmem:[%s1 + $0x23c] sm:$0xf]
      %v1391 = vunpack.c.l.b16 %v1332
      %v1392 = vunpack.c.l.b16 %v1346
      %v1393 = vunpack.c.l.b16 %v1360
      %v1394 = vunpack.c.l.b16 %v1374
      %v1395 = vpack.c.b16 %v1392, %v1391
      %v1396 = vpack.c.b16 %v1394, %v1393
      %v1415 = vunpack.c.l.b16 %v1375
      %v1416 = vunpack.c.l.b16 %v1376
      %v1417 = vunpack.c.l.b16 %v1377
      %v1418 = vunpack.c.l.b16 %v1378
      %v1419 = vunpack.c.l.b16 %v1379
      %v1420 = vunpack.c.l.b16 %v1380
      %v1421 = vunpack.c.l.b16 %v1381
      %v1422 = vunpack.c.l.b16 %v1382
      %v1423 = vunpack.c.l.b16 %v1383
      %v1424 = vunpack.c.l.b16 %v1384
      %v1425 = vunpack.c.l.b16 %v1385
      %v1426 = vunpack.c.l.b16 %v1386
      %v1427 = vunpack.c.l.b16 %v1387
      %v1428 = vunpack.c.l.b16 %v1388
      %v1429 = vunpack.c.l.b16 %v1389
      %v1430 = vunpack.c.l.b16 %v1390
      %v1431 = vpack.c.b16 %v1416, %v1415
      %v1432 = vpack.c.b16 %v1418, %v1417
      %v1433 = vpack.c.b16 %v1420, %v1419
      %v1434 = vpack.c.b16 %v1422, %v1421
      %v1435 = vpack.c.b16 %v1424, %v1423
      %v1436 = vpack.c.b16 %v1426, %v1425
      %v1437 = vpack.c.b16 %v1428, %v1427
      %v1438 = vpack.c.b16 %v1430, %v1429
      %1447 = vmatprep.subr.bf16.mxu0 0
      %1448 = vmatpush1.bf16.msra.mxu0 %v1431
      %1449 = vmatprep.subr.bf16.mxu0 0
      %1450 = vmatpush1.bf16.msra.mxu0 %v1432
      %1451 = vmatprep.subr.bf16.mxu0 0
      %1452 = vmatpush1.bf16.msra.mxu0 %v1433
      %1453 = vmatprep.subr.bf16.mxu0 0
      %1454 = vmatpush1.bf16.msra.mxu0 %v1434
      %1455 = vmatprep.subr.bf16.mxu0 0
      %1456 = vmatpush1.bf16.msra.mxu0 %v1435
      %1457 = vmatprep.subr.bf16.mxu0 0
      %1458 = vmatpush1.bf16.msra.mxu0 %v1436
      %1459 = vmatprep.subr.bf16.mxu0 0
      %1460 = vmatpush1.bf16.msra.mxu0 %v1437
      %1461 = vmatprep.subr.bf16.mxu0 0
      %1462 = vmatpush1.bf16.msra.mxu0 %v1438
      %1463 = vmatprep.subr.bf16.mxu0 0
      %1464 = vmatpush1.bf16.msra.mxu0 0
      %1465 = vmatprep.subr.bf16.mxu0 0
      %1466 = vmatpush1.bf16.msra.mxu0 0
      %1467 = vmatprep.subr.bf16.mxu0 0
      %1468 = vmatpush1.bf16.msra.mxu0 0
      %1469 = vmatprep.subr.bf16.mxu0 0
      %1470 = vmatpush1.bf16.msra.mxu0 0
      %1471 = vmatprep.subr.bf16.mxu0 0
      %1472 = vmatpush1.bf16.msra.mxu0 0
      %1473 = vmatprep.subr.bf16.mxu0 0
      %1474 = vmatpush1.bf16.msra.mxu0 0
      %1475 = vmatprep.subr.bf16.mxu0 0
      %1476 = vmatpush1.bf16.msra.mxu0 0
      %1477 = vmatprep.subr.bf16.mxu0 0
      %1478 = vmatpush1.bf16.msra.mxu0 0
      %1479 = vmatprep.mubr.bf16.mxu0 0
      %1480 = vmatmul.mubr.bf16.gmra.mrb[0].mxu0 %v1395
      %v1481 = vpop.f32.mrb[0].mxu0
      %v1482 = vadd.f32 0.0, %v1481
      %v1483 = vpop.f32.mrb[0].mxu0
      %v1484 = vpop.f32.mrb[0].mxu0
      %v1485 = vadd.f32 0.0, %v1484
      %v1486 = vpop.f32.mrb[0].mxu0
      %1487 = vmatprep.mubr.bf16.mxu0 0
      %1488 = vmatmul.mubr.bf16.gmra.mrb[0].mxu0 %v1396
      %v1489 = vpop.f32.mrb[0].mxu0
      %v1490 = vadd.f32 0.0, %v1489
      %v1491 = vpop.f32.mrb[0].mxu0
      %v1492 = vpop.f32.mrb[0].mxu0
      %v1493 = vadd.f32 0.0, %v1492
      %v1494 = vpop.f32.mrb[0].mxu0
      %1495 = vdwg.mxu0
      %v1496 = vadd.f32 %v1315, %v1482
      %v1497 = vadd.f32 %v1316, %v1485
      %v1498 = vadd.f32 %v1317, %v1490
      %v1499 = vadd.f32 %v1318, %v1493
      %v1500 = vld [vmem:[%s2] sm:$0x1]
      %v1502 = vlaneseq
      %v1503 = vshrl.u32 %v1502, 7
      %v1504 = vsub.s32 0, %v1503
      %v1505 = vrot.slane %v1500, %v1504
      %v1507 = vmul.f32 %v1496, %v1505
      %v1508 = vmul.f32 %v1497, %v1505
      %v1509 = vmul.f32 %v1498, %v1505
      %v1510 = vmul.f32 %v1499, %v1505
      %v1511 = vld [vmem:[%s3] sm:$0x1]
      %v1513 = vlaneseq
      %v1514 = vshrl.u32 %v1513, 7
      %v1515 = vsub.s32 0, %v1514
      %v1516 = vrot.slane %v1511, %v1515
      %v1518 = vadd.f32 %v1507, %v1516
      %v1519 = vadd.f32 %v1508, %v1516
      %v1520 = vadd.f32 %v1509, %v1516
      %v1521 = vadd.f32 %v1510, %v1516
      %v1522 = vmax.f32 %v1518, 0.0
      %v1523 = vmax.f32 %v1519, 0.0
      %v1524 = vmax.f32 %v1520, 0.0
      %v1525 = vmax.f32 %v1521, 0.0
      %v1526 = vpack.c.bf16 %v1523, %v1522
      %v1527 = vpack.c.bf16 %v1525, %v1524
      %v1528 = vld [vmem:[%s4] sm:$0xf]
      %v1529 = vld [vmem:[%s4 + $0x4] sm:$0xf]
      %v1530 = vld [vmem:[%s4 + $0x8] sm:$0xf]
      %v1531 = vld [vmem:[%s4 + $0xc] sm:$0xf]
      %v1532 = vld [vmem:[%s4 + $0x10] sm:$0xf]
      %v1533 = vld [vmem:[%s4 + $0x14] sm:$0xf]
      %v1534 = vld [vmem:[%s4 + $0x18] sm:$0xf]
      %v1535 = vld [vmem:[%s4 + $0x1c] sm:$0xf]
      %v1536 = vld [vmem:[%s4 + $0x20] sm:$0xf]
      %v1537 = vld [vmem:[%s4 + $0x24] sm:$0xf]
      %v1538 = vld [vmem:[%s4 + $0x28] sm:$0xf]
      %v1539 = vld [vmem:[%s4 + $0x2c] sm:$0xf]
      %v1540 = vld [vmem:[%s4 + $0x30] sm:$0xf]
      %v1541 = vld [vmem:[%s4 + $0x34] sm:$0xf]
      %v1542 = vld [vmem:[%s4 + $0x38] sm:$0xf]
      %v1543 = vld [vmem:[%s4 + $0x3c] sm:$0xf]
      %v1544 = vld [vmem:[%s331] sm:$0xf]
      %v1545 = vld [vmem:[%s331 + $0x4] sm:$0xf]
      %v1546 = vld [vmem:[%s331 + $0x8] sm:$0xf]
      %v1547 = vld [vmem:[%s331 + $0xc] sm:$0xf]
      %v1548 = vld [vmem:[%s6] sm:$0xf]
      %v1549 = vld [vmem:[%s6 + $0x4] sm:$0xf]
      %v1550 = vld [vmem:[%s6 + $0x8] sm:$0xf]
      %v1551 = vld [vmem:[%s6 + $0xc] sm:$0xf]
      %v1552 = vld [vmem:[%s6 + $0x10] sm:$0xf]
      %v1553 = vld [vmem:[%s6 + $0x14] sm:$0xf]
      %v1554 = vld [vmem:[%s6 + $0x18] sm:$0xf]
      %v1555 = vld [vmem:[%s6 + $0x1c] sm:$0xf]
      %v1556 = vld [vmem:[%s6 + $0x20] sm:$0xf]
      %v1557 = vld [vmem:[%s6 + $0x24] sm:$0xf]
      %v1558 = vld [vmem:[%s6 + $0x28] sm:$0xf]
      %v1559 = vld [vmem:[%s6 + $0x2c] sm:$0xf]
      %v1560 = vld [vmem:[%s6 + $0x30] sm:$0xf]
      %v1561 = vld [vmem:[%s6 + $0x34] sm:$0xf]
      %v1562 = vld [vmem:[%s6 + $0x38] sm:$0xf]
      %v1563 = vld [vmem:[%s6 + $0x3c] sm:$0xf]
      %v1568 = vunpack.c.l.b16 %v1544
      %v1569 = vunpack.c.l.b16 %v1545
      %v1570 = vunpack.c.l.b16 %v1546
      %v1571 = vunpack.c.l.b16 %v1547
      %v1572 = vpack.c.b16 %v1569, %v1568
      %v1573 = vpack.c.b16 %v1571, %v1570
      %v1592 = vunpack.c.l.b16 %v1548
      %v1593 = vunpack.c.l.b16 %v1549
      %v1594 = vunpack.c.l.b16 %v1550
      %v1595 = vunpack.c.l.b16 %v1551
      %v1596 = vunpack.c.l.b16 %v1552
      %v1597 = vunpack.c.l.b16 %v1553
      %v1598 = vunpack.c.l.b16 %v1554
      %v1599 = vunpack.c.l.b16 %v1555
      %v1600 = vunpack.c.l.b16 %v1556
      %v1601 = vunpack.c.l.b16 %v1557
      %v1602 = vunpack.c.l.b16 %v1558
      %v1603 = vunpack.c.l.b16 %v1559
      %v1604 = vunpack.c.l.b16 %v1560
      %v1605 = vunpack.c.l.b16 %v1561
      %v1606 = vunpack.c.l.b16 %v1562
      %v1607 = vunpack.c.l.b16 %v1563
      %v1608 = vpack.c.b16 %v1593, %v1592
      %v1609 = vpack.c.b16 %v1595, %v1594
      %v1610 = vpack.c.b16 %v1597, %v1596
      %v1611 = vpack.c.b16 %v1599, %v1598
      %v1612 = vpack.c.b16 %v1601, %v1600
      %v1613 = vpack.c.b16 %v1603, %v1602
      %v1614 = vpack.c.b16 %v1605, %v1604
      %v1615 = vpack.c.b16 %v1607, %v1606
      %1624 = vmatprep.subr.bf16.mxu0 0
      %1625 = vmatpush1.bf16.msra.mxu0 %v1608
      %1626 = vmatprep.subr.bf16.mxu0 0
      %1627 = vmatpush1.bf16.msra.mxu0 %v1609
      %1628 = vmatprep.subr.bf16.mxu0 0
      %1629 = vmatpush1.bf16.msra.mxu0 %v1610
      %1630 = vmatprep.subr.bf16.mxu0 0
      %1631 = vmatpush1.bf16.msra.mxu0 %v1611
      %1632 = vmatprep.subr.bf16.mxu0 0
      %1633 = vmatpush1.bf16.msra.mxu0 %v1612
      %1634 = vmatprep.subr.bf16.mxu0 0
      %1635 = vmatpush1.bf16.msra.mxu0 %v1613
      %1636 = vmatprep.subr.bf16.mxu0 0
      %1637 = vmatpush1.bf16.msra.mxu0 %v1614
      %1638 = vmatprep.subr.bf16.mxu0 0
      %1639 = vmatpush1.bf16.msra.mxu0 %v1615
      %1640 = vmatprep.subr.bf16.mxu0 0
      %1641 = vmatpush1.bf16.msra.mxu0 0
      %1642 = vmatprep.subr.bf16.mxu0 0
      %1643 = vmatpush1.bf16.msra.mxu0 0
      %1644 = vmatprep.subr.bf16.mxu0 0
      %1645 = vmatpush1.bf16.msra.mxu0 0
      %1646 = vmatprep.subr.bf16.mxu0 0
      %1647 = vmatpush1.bf16.msra.mxu0 0
      %1648 = vmatprep.subr.bf16.mxu0 0
      %1649 = vmatpush1.bf16.msra.mxu0 0
      %1650 = vmatprep.subr.bf16.mxu0 0
      %1651 = vmatpush1.bf16.msra.mxu0 0
      %1652 = vmatprep.subr.bf16.mxu0 0
      %1653 = vmatpush1.bf16.msra.mxu0 0
      %1654 = vmatprep.subr.bf16.mxu0 0
      %1655 = vmatpush1.bf16.msra.mxu0 0
      %1656 = vmatprep.mubr.bf16.mxu0 0
      %1657 = vmatmul.mubr.bf16.gmra.mrb[0].mxu0 %v1572
      %v1658 = vpop.f32.mrb[0].mxu0
      %v1659 = vadd.f32 0.0, %v1658
      %v1660 = vpop.f32.mrb[0].mxu0
      %v1661 = vpop.f32.mrb[0].mxu0
      %v1662 = vadd.f32 0.0, %v1661
      %v1663 = vpop.f32.mrb[0].mxu0
      %1664 = vmatprep.mubr.bf16.mxu0 0
      %1665 = vmatmul.mubr.bf16.gmra.mrb[0].mxu0 %v1573
      %v1666 = vpop.f32.mrb[0].mxu0
      %v1667 = vadd.f32 0.0, %v1666
      %v1668 = vpop.f32.mrb[0].mxu0
      %v1669 = vpop.f32.mrb[0].mxu0
      %v1670 = vadd.f32 0.0, %v1669
      %v1671 = vpop.f32.mrb[0].mxu0
      %1672 = vdwg.mxu0
      %v1689 = vunpack.c.l.b16 %v1528
      %v1690 = vunpack.c.l.b16 %v1529
      %v1691 = vunpack.c.l.b16 %v1530
      %v1692 = vunpack.c.l.b16 %v1531
      %v1693 = vunpack.c.l.b16 %v1532
      %v1694 = vunpack.c.l.b16 %v1533
      %v1695 = vunpack.c.l.b16 %v1534
      %v1696 = vunpack.c.l.b16 %v1535
      %v1697 = vunpack.c.l.b16 %v1536
      %v1698 = vunpack.c.l.b16 %v1537
      %v1699 = vunpack.c.l.b16 %v1538
      %v1700 = vunpack.c.l.b16 %v1539
      %v1701 = vunpack.c.l.b16 %v1540
      %v1702 = vunpack.c.l.b16 %v1541
      %v1703 = vunpack.c.l.b16 %v1542
      %v1704 = vunpack.c.l.b16 %v1543
      %v1705 = vpack.c.b16 %v1690, %v1689
      %v1706 = vpack.c.b16 %v1692, %v1691
      %v1707 = vpack.c.b16 %v1694, %v1693
      %v1708 = vpack.c.b16 %v1696, %v1695
      %v1709 = vpack.c.b16 %v1698, %v1697
      %v1710 = vpack.c.b16 %v1700, %v1699
      %v1711 = vpack.c.b16 %v1702, %v1701
      %v1712 = vpack.c.b16 %v1704, %v1703
      %1721 = vmatprep.subr.bf16.mxu0 0
      %1722 = vmatpush1.bf16.msra.mxu0 %v1705
      %1723 = vmatprep.subr.bf16.mxu0 0
      %1724 = vmatpush1.bf16.msra.mxu0 %v1706
      %1725 = vmatprep.subr.bf16.mxu0 0
      %1726 = vmatpush1.bf16.msra.mxu0 %v1707
      %1727 = vmatprep.subr.bf16.mxu0 0
      %1728 = vmatpush1.bf16.msra.mxu0 %v1708
      %1729 = vmatprep.subr.bf16.mxu0 0
      %1730 = vmatpush1.bf16.msra.mxu0 %v1709
      %1731 = vmatprep.subr.bf16.mxu0 0
      %1732 = vmatpush1.bf16.msra.mxu0 %v1710
      %1733 = vmatprep.subr.bf16.mxu0 0
      %1734 = vmatpush1.bf16.msra.mxu0 %v1711
      %1735 = vmatprep.subr.bf16.mxu0 0
      %1736 = vmatpush1.bf16.msra.mxu0 %v1712
      %1737 = vmatprep.subr.bf16.mxu0 0
      %1738 = vmatpush1.bf16.msra.mxu0 0
      %1739 = vmatprep.subr.bf16.mxu0 0
      %1740 = vmatpush1.bf16.msra.mxu0 0
      %1741 = vmatprep.subr.bf16.mxu0 0
      %1742 = vmatpush1.bf16.msra.mxu0 0
      %1743 = vmatprep.subr.bf16.mxu0 0
      %1744 = vmatpush1.bf16.msra.mxu0 0
      %1745 = vmatprep.subr.bf16.mxu0 0
      %1746 = vmatpush1.bf16.msra.mxu0 0
      %1747 = vmatprep.subr.bf16.mxu0 0
      %1748 = vmatpush1.bf16.msra.mxu0 0
      %1749 = vmatprep.subr.bf16.mxu0 0
      %1750 = vmatpush1.bf16.msra.mxu0 0
      %1751 = vmatprep.subr.bf16.mxu0 0
      %1752 = vmatpush1.bf16.msra.mxu0 0
      %1753 = vmatprep.mubr.bf16.mxu0 0
      %1754 = vmatmul.mubr.bf16.gmra.mrb[0].mxu0 %v1526
      %v1755 = vpop.f32.mrb[0].mxu0
      %v1756 = vadd.f32 %v1659, %v1755
      %v1757 = vpop.f32.mrb[0].mxu0
      %v1758 = vpop.f32.mrb[0].mxu0
      %v1759 = vadd.f32 %v1662, %v1758
      %v1760 = vpop.f32.mrb[0].mxu0
      %1761 = vmatprep.mubr.bf16.mxu0 0
      %1762 = vmatmul.mubr.bf16.gmra.mrb[0].mxu0 %v1527
      %v1763 = vpop.f32.mrb[0].mxu0
      %v1764 = vadd.f32 %v1667, %v1763
      %v1765 = vpop.f32.mrb[0].mxu0
      %v1766 = vpop.f32.mrb[0].mxu0
      %v1767 = vadd.f32 %v1670, %v1766
      %v1768 = vpop.f32.mrb[0].mxu0
      %1769 = vdwg.mxu0
      %1770 = vst [vmem:[%s341] sm:$0xff] %v1756
      %1771 = vst [vmem:[%s341 + $0x8] sm:$0xff] %v1759
      %1772 = vst [vmem:[%s341 + $0x10] sm:$0xff] %v1764
      %1773 = vst [vmem:[%s341 + $0x18] sm:$0xff] %v1767
      %s1774 = smul.u32 4, %s23
      %p1775 = scmp.lt.s32.totalorder %s22, 1
      %s1776 = scalar_select %p1775, %s22, 1
      %p1777 = scmp.lt.s32.totalorder %s1774, 7
      %s1778 = scalar_select %p1777, %s1774, 7
      %s1779 = smul.addr %s1776, 8
      %s1780 = sadd.s32 %s1778, %s1779
      %s1781 = smul.addr %s1780, 8
      %s1782 = scalar_lea.vmem %s7, %s1781
      // Predicated region
      $region49: #{preact_bottleneck_forward.3} parent=47 // pred_check
        %p1783 = pneg %p209
      $region50: #{preact_bottleneck_forward.3} parent=47 // pred_check_branch
        %1785 = sbr.rel (%p1783) target = $region52
      $region51: #{preact_bottleneck_forward.3} parent=47 // pred_region
        %s1786 = smul.u32 4, %s23
      $region52: #{preact_bottleneck_forward.3} parent=47 // pred_fallthru
        _
    $region48: #{preact_bottleneck_forward.3} parent=5 // pred_fallthru
      _
    %p1787 = scmp.le.s32.totalorder 2, %s13
    // Predicated region
    $region53: #{preact_bottleneck_forward.3} parent=5 // pred_check
      %p1788 = pneg %p1787
    $region54: #{preact_bottleneck_forward.3} parent=5 // pred_check_branch
      %1790 = sbr.rel (%p1788) target = $region56
    $region55: #{preact_bottleneck_forward.3} parent=5 // pred_region
      %s1791 = ssub.s32 %s13, 2
      // Predicated region
      $region57: #{preact_bottleneck_forward.3} parent=55 // pred_check
        %p1792 = pneg %p215
      $region58: #{preact_bottleneck_forward.3} parent=55 // pred_check_branch
        %1794 = sbr.rel (%p1792) target = $region60
      $region59: #{preact_bottleneck_forward.3} parent=55 // pred_region
        %s1795 = smul.u32 4, %s25
        %p1796 = scmp.lt.s32.totalorder %s24, 1
        %s1797 = scalar_select %p1796, %s24, 1
        %p1798 = scmp.lt.s32.totalorder %s1795, 7
        %s1799 = scalar_select %p1798, %s1795, 7
        %s1800 = smul.addr %s1797, 8
        %s1801 = sadd.s32 %s1799, %s1800
        %s1802 = smul.addr %s1801, 8
        %s1803 = scalar_lea.vmem %s7, %s1802
      $region60: #{preact_bottleneck_forward.3} parent=55 // pred_fallthru
        _
    $region56: #{preact_bottleneck_forward.3} parent=5 // pred_fallthru
      _
  $region6: #{preact_bottleneck_forward.3} parent=0 // loop_footer
    %s17 = sadd.s32 1, %s13
  $region7: #{preact_bottleneck_forward.3} parent=0 // loop_footer_branch
    %12 = sbr.rel target = $region3
  $region8: #{preact_bottleneck_forward.3} parent=0 // loop_exit
    _

</llo_original>
